<compile_context>
chip_gen: v6e
topology: v6e:2x2x1
jax: 0.10.0
libtpu: 0.0.40
codegen_flags: <defaults>
</compile_context>

<pallas_src>
import jax
import jax.numpy as jnp
from jax.experimental import pallas as pl
from jax.experimental.pallas import tpu as pltpu


_NEG_SLOPE = 0.2
_PIXEL_NORM_EPS = 1e-8


# ------------------------------------------------------------------------------
# VMEM budgeting (generation-aware).
# ------------------------------------------------------------------------------

def _vmem_capacity_bytes():
    try:
        info = pltpu.get_tpu_info()
        cap = getattr(info, "vmem_capacity_bytes", None)
        if cap:
            return int(cap)
    except Exception:
        pass
    return 64 * 1024 * 1024  # conservative (v7x per-core VMEM)


def _vmem_budget_bytes():
    # Use at most half of physical VMEM; safely above the scoped defaults once we
    # set vmem_limit_bytes explicitly, and leaves headroom for the rest of the graph.
    return _vmem_capacity_bytes() // 2


def _fused_vmem_bytes(B, D, n_mlp, x_itemsize):
    wbuf = 2 * D * D * 2                 # 2-slot bf16 layer-weight scratch
    bias = 2 * n_mlp * D * 4             # bias block (x2 pipeline buffers)
    acts = 2 * 2 * B * D * x_itemsize    # input + output blocks (x2 buffers)
    temps = 6 * B * D * 4                # h / y f32 temporaries + headroom
    return wbuf + bias + acts + temps


def _streamed_vmem_bytes(B, D, tn, x_itemsize):
    w = 2 * D * tn * 2                   # weight column tile (x2 buffers)
    bias = 2 * tn * 4
    xin = 2 * B * D * x_itemsize
    outb = 2 * B * tn * x_itemsize
    h2 = 2 * B * D * 2                   # two bf16 activation slots (scratch)
    temps = 6 * B * tn * 4
    return w + bias + xin + outb + h2 + temps


def _pick_tn(B, D, x_itemsize, budget):
    for tn in (1024, 512, 256, 128):
        if D % tn == 0 and _streamed_vmem_bytes(B, D, tn, x_itemsize) <= budget:
            return tn
    for tn in (1024, 512, 256, 128):     # best effort even if estimate is tight
        if D % tn == 0:
            return tn
    return D                             # odd / small D: single full-width tile


def _cost_estimate(B, D, n_mlp, w_itemsize, x_itemsize):
    flops = 2 * n_mlp * B * D * D
    bytes_accessed = (n_mlp * D * D * w_itemsize      # weights (dominant)
                      + n_mlp * D * 4                 # biases
                      + 2 * B * D * x_itemsize)       # input + output
    return pl.CostEstimate(flops=flops, transcendentals=B,
                           bytes_accessed=bytes_accessed)


# ------------------------------------------------------------------------------
# Fast path: single grid step, weights streamed layer-by-layer from HBM.
# ------------------------------------------------------------------------------

def _fused_kernel(x_ref, b_ref, w_hbm, o_ref, wbuf, sem):
    """x_ref: (B, D); b_ref: (n_mlp, D) f32; w_hbm: (n_mlp, D, D) bf16 in HBM;
    wbuf: (2, D, D) bf16 VMEM scratch; sem: DMA semaphores (2,)."""
    n_mlp = b_ref.shape[0]

    def _start(k):
        pltpu.make_async_copy(w_hbm.at[k], wbuf.at[k % 2], sem.at[k % 2]).start()

    def _wait(k):
        pltpu.make_async_copy(w_hbm.at[k], wbuf.at[k % 2], sem.at[k % 2]).wait()

    _start(0)                                              # prefetch layer 0 weights

    # PixelNorm (f32), then carry activations in bf16.
    x = x_ref[...].astype(jnp.float32)
    ms = jnp.mean(x * x, axis=1, keepdims=True)
    h = (x * jax.lax.rsqrt(ms + _PIXEL_NORM_EPS)).astype(jnp.bfloat16)

    for k in range(n_mlp):                                 # trace-time unrolled
        _wait(k)
        if k + 1 < n_mlp:
            _start(k + 1)                                  # prefetch next layer
        b = b_ref[k].astype(jnp.float32)                   # (D,)
        y = jnp.dot(h, wbuf[k % 2],
                    preferred_element_type=jnp.float32) + b[None, :]
        y = jnp.maximum(y, _NEG_SLOPE * y)                 # LeakyReLU(0.2)
        h = y.astype(jnp.bfloat16) if k + 1 < n_mlp else y

    o_ref[...] = h.astype(o_ref.dtype)


def _mapping_call_fused(x, w_bf16, b_f32, *, vmem_limit):
    B, D = x.shape
    n_mlp = w_bf16.shape[0]
    return pl.pallas_call(
        _fused_kernel,
        out_shape=jax.ShapeDtypeStruct((B, D), x.dtype),
        grid_spec=pltpu.PrefetchScalarGridSpec(
            num_scalar_prefetch=0,
            grid=(1,),
            in_specs=[
                pl.BlockSpec((B, D), lambda i: (0, 0)),        # activations
                pl.BlockSpec((n_mlp, D), lambda i: (0, 0)),    # all biases (small)
                pl.BlockSpec(memory_space=pl.ANY),             # weights stay in HBM
            ],
            out_specs=pl.BlockSpec((B, D), lambda i: (0, 0)),
            scratch_shapes=[
                pltpu.VMEM((2, D, D), jnp.bfloat16),           # 2-slot weight buffer
                pltpu.SemaphoreType.DMA((2,)),
            ],
        ),
        compiler_params=pltpu.CompilerParams(
            dimension_semantics=("arbitrary",),
            vmem_limit_bytes=int(vmem_limit)),
        cost_estimate=_cost_estimate(B, D, n_mlp, 2, x.dtype.itemsize),
    )(x, b_f32, w_bf16)


# ------------------------------------------------------------------------------
# Fallback for very large D: per-layer grid with output-column tiling.
# ------------------------------------------------------------------------------

def _streamed_kernel(x_ref, w_ref, b_ref, o_ref, h2_ref):
    """grid = (n_mlp, D // tn). Layer k reads activation slot k%2, writes (k+1)%2."""
    k = pl.program_id(0)
    j = pl.program_id(1)
    tn = w_ref.shape[2]

    @pl.when(jnp.logical_and(k == 0, j == 0))
    def _():
        x = x_ref[...].astype(jnp.float32)
        ms = jnp.mean(x * x, axis=1, keepdims=True)
        h2_ref[0] = (x * jax.lax.rsqrt(ms + _PIXEL_NORM_EPS)).astype(h2_ref.dtype)

    src = k % 2
    h = h2_ref[src]                                        # (B, D) bf16
    w = w_ref[0]                                           # (D, tn) bf16
    b = b_ref[0].astype(jnp.float32)                       # (tn,)

    y = jnp.dot(h, w, preferred_element_type=jnp.float32) + b[None, :]
    y = jnp.maximum(y, _NEG_SLOPE * y)                     # LeakyReLU(0.2)
    y_st = y.astype(h2_ref.dtype)

    col = j * tn
    if tn % 128 == 0:
        col = pl.multiple_of(col, 128)

    @pl.when(src == 0)
    def _():
        h2_ref[1, :, pl.ds(col, tn)] = y_st

    @pl.when(src == 1)
    def _():
        h2_ref[0, :, pl.ds(col, tn)] = y_st

    @pl.when(k == pl.num_programs(0) - 1)
    def _():
        o_ref[...] = y.astype(o_ref.dtype)


def _mapping_call_streamed(x, w_bf16, b_f32, tn, *, vmem_limit):
    B, D = x.shape
    n_mlp = w_bf16.shape[0]
    n_tiles = D // tn
    return pl.pallas_call(
        _streamed_kernel,
        out_shape=jax.ShapeDtypeStruct((B, D), x.dtype),
        grid_spec=pltpu.PrefetchScalarGridSpec(
            num_scalar_prefetch=0,
            grid=(n_mlp, n_tiles),
            in_specs=[
                pl.BlockSpec((B, D), lambda k, j: (0, 0)),        # input (resident)
                pl.BlockSpec((1, D, tn), lambda k, j: (k, 0, j)), # weight column tile
                pl.BlockSpec((1, tn), lambda k, j: (k, j)),       # bias tile
            ],
            out_specs=pl.BlockSpec((B, tn), lambda k, j: (0, j)),
            scratch_shapes=[pltpu.VMEM((2, B, D), jnp.bfloat16)], # ping-pong activations
        ),
        compiler_params=pltpu.CompilerParams(
            dimension_semantics=("arbitrary", "arbitrary"),
            vmem_limit_bytes=int(vmem_limit)),
        cost_estimate=_cost_estimate(B, D, n_mlp, 2, x.dtype.itemsize),
    )(x, w_bf16, b_f32)


# ------------------------------------------------------------------------------
# Public wrappers.
# ------------------------------------------------------------------------------

def mapping_network(x, weights, biases, *, tn=None):
    """x: [B, D]; weights: [n_mlp, D, D] (in, out); biases: [n_mlp, D].
    Pass tn to force the column-tiled streaming fallback (mostly for testing)."""
    n_mlp, D, d_out = weights.shape
    assert d_out == D, "MappingNetowrk uses square code_dim x code_dim layers"

    # bf16 weights halve the dominant HBM streaming bytes (deliberate precision trade).
    w_bf16 = weights.astype(jnp.bfloat16)
    b_f32 = biases.astype(jnp.float32)

    b0 = x.shape[0]
    pad = (-b0) % 16                 # bf16 sublane tile is (16, 128)
    if pad:
        x = jnp.pad(x, ((0, pad), (0, 0)))
    B = x.shape[0]

    budget = _vmem_budget_bytes()

    if tn is None and _fused_vmem_bytes(B, D, n_mlp, x.dtype.itemsize) <= budget:
        out = _mapping_call_fused(x, w_bf16, b_f32, vmem_limit=budget)
    else:
        tn_sel = tn if tn is not None else _pick_tn(B, D, x.dtype.itemsize, budget)
        out = _mapping_call_streamed(x, w_bf16, b_f32, tn_sel, vmem_limit=budget)

    return out[:b0] if pad else out


def mapping_network_forward(inputs, weights, biases):
    """Mirrors MappingNetowrk.forward: accepts an array or list/tuple, returns a list.

    All inputs are fused into one batch so weights are streamed from HBM exactly once
    and the MXU sees a fuller row tile; results are split back per input.
    """
    if not isinstance(inputs, (list, tuple)):
        inputs = [inputs]
    inputs = [jnp.asarray(i) for i in inputs]
    sizes = [int(i.shape[0]) for i in inputs]
    x = inputs[0] if len(inputs) == 1 else jnp.concatenate(inputs, axis=0)

    out = mapping_network(x, weights, biases)

    styles, off = [], 0
    for s in sizes:
        styles.append(out[off:off + s])
        off += s
    return styles


def _reference(x, weights, biases):
    # Pure-JAX reference of PixelNorm + n_mlp x (Linear -> LeakyReLU(0.2)).
    h = x / jnp.sqrt(jnp.mean(x * x, axis=1, keepdims=True) + _PIXEL_NORM_EPS)
    for k in range(weights.shape[0]):
        h = h @ weights[k] + biases[k]
        h = jnp.maximum(h, _NEG_SLOPE * h)
    return h


if __name__ == "__main__":
    # Small shapes consistent with the module (code_dim default 512, shrunk here).
    B, D, N_MLP = 8, 128, 8

    key = jax.random.PRNGKey(0)
    kx1, kx2, kw, kb, kx3, kw2, kb2 = jax.random.split(key, 7)

    x1 = jax.random.normal(kx1, (B, D), dtype=jnp.float32)
    x2 = jax.random.normal(kx2, (5, D), dtype=jnp.float32)     # ragged second input

    # nn.Linear-style uniform(-1/sqrt(in), 1/sqrt(in)) weights; small random biases
    # (the module zeroes them at init, but the forward semantics include the add).
    bound = 1.0 / (D ** 0.5)
    weights = jax.random.uniform(kw, (N_MLP, D, D), jnp.float32, -bound, bound)
    biases = 0.05 * jax.random.normal(kb, (N_MLP, D), dtype=jnp.float32)

    # Reference uses the same bf16-rounded weights the kernel streams.
    w_rounded = weights.astype(jnp.bfloat16).astype(jnp.float32)
    ref1 = _reference(x1, w_rounded, biases)
    ref2 = _reference(x2, w_rounded, biases)

    # 1) list-of-inputs forward (fused batch, single-step weight-streaming path).
    styles = mapping_network_forward([x1, x2], weights, biases)
    styles = jax.block_until_ready(styles)
    assert len(styles) == 2
    assert styles[0].shape == (B, D) and styles[1].shape == (5, D)
    assert jnp.allclose(styles[0], ref1, atol=5e-3, rtol=2e-2), "fused mismatch (x1)"
    assert jnp.allclose(styles[1], ref2, atol=5e-3, rtol=2e-2), "fused mismatch (x2)"

    # 2) exercise the column-tiled streaming fallback (forced tn -> 2 column tiles).
    D2, N2 = 256, 4
    x3 = jax.random.normal(kx3, (16, D2), dtype=jnp.float32)
    bound2 = 1.0 / (D2 ** 0.5)
    w2 = jax.random.uniform(kw2, (N2, D2, D2), jnp.float32, -bound2, bound2)
    b2 = 0.05 * jax.random.normal(kb2, (N2, D2), dtype=jnp.float32)
    ref3 = _reference(x3, w2.astype(jnp.bfloat16).astype(jnp.float32), b2)

    out3 = mapping_network(x3, w2, b2, tn=128)
    out3 = jax.block_until_ready(out3)
    assert out3.shape == (16, D2)
    assert jnp.allclose(out3, ref3, atol=5e-3, rtol=2e-2), "streamed mismatch"

    print("KERNEL_OK")
</pallas_src>

<mosaic_0001>
module attributes {stable_mosaic.version = 11 : i64} {
  func.func @_fused_kernel(%arg0: i32, %arg1: memref<16x128xf32, #tpu.memory_space<vmem>>, %arg2: memref<8x128xf32, #tpu.memory_space<vmem>>, %arg3: memref<8x128x128xbf16, #tpu.memory_space<any>>, %arg4: memref<16x128xf32, #tpu.memory_space<vmem>>, %arg5: memref<2x128x128xbf16, #tpu.memory_space<vmem>>, %arg6: memref<2x!tpu.dma_semaphore, #tpu.memory_space<semaphore_mem>>) attributes {dimension_semantics = [#tpu.dimension_semantics<arbitrary>], iteration_bounds = array<i64: 1>, scalar_prefetch = 0 : i64, scratch_operands = 2 : i64, tpu.core_type = #tpu.core_type<tc>, window_params = [{pipeline_mode = #tpu.pipeline_mode<synchronous>, transform_indices = @transform_0, window_bounds = array<i64: 16, 128>}, {pipeline_mode = #tpu.pipeline_mode<synchronous>, transform_indices = @transform_1, window_bounds = array<i64: 8, 128>}, {}, {pipeline_mode = #tpu.pipeline_mode<synchronous>, transform_indices = @transform_3, window_bounds = array<i64: 16, 128>}]} {
    %c0_i32 = arith.constant 0 : i32
    %c0_i32_0 = arith.constant 0 : i32
    %c0_i32_1 = arith.constant 0 : i32
    %c0_i32_2 = arith.constant 0 : i32
    %c0_i32_3 = arith.constant 0 : i32
    %0 = tpu.memref_slice %arg3[%c0_i32, %c0_i32_2, %c0_i32_3] : memref<8x128x128xbf16, #tpu.memory_space<any>> -> memref<1x128x128xbf16, #tpu.memory_space<any>>
    %1 = tpu.memref_squeeze %0 : memref<1x128x128xbf16, #tpu.memory_space<any>> -> memref<128x128xbf16, #tpu.memory_space<any>>
    %c0_i32_4 = arith.constant 0 : i32
    %c0_i32_5 = arith.constant 0 : i32
    %2 = tpu.memref_slice %arg5[%c0_i32_0, %c0_i32_4, %c0_i32_5] : memref<2x128x128xbf16, #tpu.memory_space<vmem>> -> memref<1x128x128xbf16, #tpu.memory_space<vmem>>
    %3 = tpu.memref_squeeze %2 : memref<1x128x128xbf16, #tpu.memory_space<vmem>> -> memref<128x128xbf16, #tpu.memory_space<vmem>>
    %4 = tpu.memref_slice %arg6[%c0_i32_1] : memref<2x!tpu.dma_semaphore, #tpu.memory_space<semaphore_mem>> -> memref<1x!tpu.dma_semaphore, #tpu.memory_space<semaphore_mem>>
    %5 = tpu.memref_squeeze %4 : memref<1x!tpu.dma_semaphore, #tpu.memory_space<semaphore_mem>> -> memref<!tpu.dma_semaphore, #tpu.memory_space<semaphore_mem>>
    tpu.enqueue_dma source(%1 : memref<128x128xbf16, #tpu.memory_space<any>>) target(%3 : memref<128x128xbf16, #tpu.memory_space<vmem>>) target_semaphore(%5 : memref<!tpu.dma_semaphore, #tpu.memory_space<semaphore_mem>>)
    %c0 = arith.constant 0 : index
    %c0_6 = arith.constant 0 : index
    %6 = vector.load %arg1[%c0, %c0_6] : memref<16x128xf32, #tpu.memory_space<vmem>>, vector<16x128xf32>
    %7 = arith.mulf %6, %6 : vector<16x128xf32>
    %cst = arith.constant dense<0.000000e+00> : vector<16xf32>
    %8 = vector.multi_reduction <add>, %7, %cst [1] : vector<16x128xf32> to vector<16xf32>
    %9 = vector.shape_cast %8 : vector<16xf32> to vector<16x1xf32>
    %cst_7 = arith.constant 1.280000e+02 : f32
    %10 = vector.broadcast %cst_7 : f32 to vector<16x1xf32>
    %11 = arith.divf %9, %10 : vector<16x1xf32>
    %cst_8 = arith.constant 9.99999993E-9 : f32
    %12 = vector.broadcast %cst_8 : f32 to vector<16x1xf32>
    %13 = arith.addf %11, %12 : vector<16x1xf32>
    %14 = math.rsqrt %13 : vector<16x1xf32>
    %15 = vector.broadcast %14 : vector<16x1xf32> to vector<16x128xf32>
    %16 = arith.mulf %6, %15 : vector<16x128xf32>
    %17 = arith.truncf %16 : vector<16x128xf32> to vector<16x128xbf16>
    %c0_i32_9 = arith.constant 0 : i32
    %c0_i32_10 = arith.constant 0 : i32
    %c0_i32_11 = arith.constant 0 : i32
    %c0_i32_12 = arith.constant 0 : i32
    %c0_i32_13 = arith.constant 0 : i32
    %18 = tpu.memref_slice %arg3[%c0_i32_9, %c0_i32_12, %c0_i32_13] : memref<8x128x128xbf16, #tpu.memory_space<any>> -> memref<1x128x128xbf16, #tpu.memory_space<any>>
    %19 = tpu.memref_squeeze %18 : memref<1x128x128xbf16, #tpu.memory_space<any>> -> memref<128x128xbf16, #tpu.memory_space<any>>
    %c0_i32_14 = arith.constant 0 : i32
    %c0_i32_15 = arith.constant 0 : i32
    %20 = tpu.memref_slice %arg5[%c0_i32_10, %c0_i32_14, %c0_i32_15] : memref<2x128x128xbf16, #tpu.memory_space<vmem>> -> memref<1x128x128xbf16, #tpu.memory_space<vmem>>
    %21 = tpu.memref_squeeze %20 : memref<1x128x128xbf16, #tpu.memory_space<vmem>> -> memref<128x128xbf16, #tpu.memory_space<vmem>>
    %22 = tpu.memref_slice %arg6[%c0_i32_11] : memref<2x!tpu.dma_semaphore, #tpu.memory_space<semaphore_mem>> -> memref<1x!tpu.dma_semaphore, #tpu.memory_space<semaphore_mem>>
    %23 = tpu.memref_squeeze %22 : memref<1x!tpu.dma_semaphore, #tpu.memory_space<semaphore_mem>> -> memref<!tpu.dma_semaphore, #tpu.memory_space<semaphore_mem>>
    tpu.wait_dma2 semaphore(%23 : memref<!tpu.dma_semaphore, #tpu.memory_space<semaphore_mem>>) src(%19 : memref<128x128xbf16, #tpu.memory_space<any>>) dst(%21 : memref<128x128xbf16, #tpu.memory_space<vmem>>)
    %c1_i32 = arith.constant 1 : i32
    %c1_i32_16 = arith.constant 1 : i32
    %c1_i32_17 = arith.constant 1 : i32
    %c0_i32_18 = arith.constant 0 : i32
    %c0_i32_19 = arith.constant 0 : i32
    %24 = tpu.memref_slice %arg3[%c1_i32, %c0_i32_18, %c0_i32_19] : memref<8x128x128xbf16, #tpu.memory_space<any>> -> memref<1x128x128xbf16, #tpu.memory_space<any>>
    %25 = tpu.memref_squeeze %24 : memref<1x128x128xbf16, #tpu.memory_space<any>> -> memref<128x128xbf16, #tpu.memory_space<any>>
    %c0_i32_20 = arith.constant 0 : i32
    %c0_i32_21 = arith.constant 0 : i32
    %26 = tpu.memref_slice %arg5[%c1_i32_16, %c0_i32_20, %c0_i32_21] : memref<2x128x128xbf16, #tpu.memory_space<vmem>> -> memref<1x128x128xbf16, #tpu.memory_space<vmem>>
    %27 = tpu.memref_squeeze %26 : memref<1x128x128xbf16, #tpu.memory_space<vmem>> -> memref<128x128xbf16, #tpu.memory_space<vmem>>
    %28 = tpu.memref_slice %arg6[%c1_i32_17] : memref<2x!tpu.dma_semaphore, #tpu.memory_space<semaphore_mem>> -> memref<1x!tpu.dma_semaphore, #tpu.memory_space<semaphore_mem>>
    %29 = tpu.memref_squeeze %28 : memref<1x!tpu.dma_semaphore, #tpu.memory_space<semaphore_mem>> -> memref<!tpu.dma_semaphore, #tpu.memory_space<semaphore_mem>>
    tpu.enqueue_dma source(%25 : memref<128x128xbf16, #tpu.memory_space<any>>) target(%27 : memref<128x128xbf16, #tpu.memory_space<vmem>>) target_semaphore(%29 : memref<!tpu.dma_semaphore, #tpu.memory_space<semaphore_mem>>)
    %c0_22 = arith.constant 0 : index
    %c0_23 = arith.constant 0 : index
    %30 = vector.load %arg2[%c0_22, %c0_23] : memref<8x128xf32, #tpu.memory_space<vmem>>, vector<1x128xf32>
    %31 = vector.shape_cast %30 : vector<1x128xf32> to vector<128xf32>
    %c0_24 = arith.constant 0 : index
    %c0_25 = arith.constant 0 : index
    %c0_26 = arith.constant 0 : index
    %32 = vector.load %arg5[%c0_24, %c0_25, %c0_26] : memref<2x128x128xbf16, #tpu.memory_space<vmem>>, vector<1x128x128xbf16>
    %33 = vector.shape_cast %32 : vector<1x128x128xbf16> to vector<128x128xbf16>
    %cst_27 = arith.constant dense<0.000000e+00> : vector<16x128xf32>
    %34 = tpu.matmul %17, %33, %cst_27 {dimension_numbers = #tpu.dot_dimension_numbers<[1], [0], [0], [1], [0, 0, 1, 1], [], []>} : vector<16x128xbf16>, vector<128x128xbf16>, vector<16x128xf32> -> vector<16x128xf32>
    %35 = vector.shape_cast %31 : vector<128xf32> to vector<1x128xf32>
    %36 = vector.broadcast %35 : vector<1x128xf32> to vector<16x128xf32>
    %37 = arith.addf %34, %36 : vector<16x128xf32>
    %cst_28 = arith.constant 2.000000e-01 : f32
    %38 = vector.broadcast %cst_28 : f32 to vector<16x128xf32>
    %39 = arith.mulf %38, %37 : vector<16x128xf32>
    %40 = arith.maximumf %37, %39 : vector<16x128xf32>
    %41 = arith.truncf %40 : vector<16x128xf32> to vector<16x128xbf16>
    %c1_i32_29 = arith.constant 1 : i32
    %c1_i32_30 = arith.constant 1 : i32
    %c1_i32_31 = arith.constant 1 : i32
    %c0_i32_32 = arith.constant 0 : i32
    %c0_i32_33 = arith.constant 0 : i32
    %42 = tpu.memref_slice %arg3[%c1_i32_29, %c0_i32_32, %c0_i32_33] : memref<8x128x128xbf16, #tpu.memory_space<any>> -> memref<1x128x128xbf16, #tpu.memory_space<any>>
    %43 = tpu.memref_squeeze %42 : memref<1x128x128xbf16, #tpu.memory_space<any>> -> memref<128x128xbf16, #tpu.memory_space<any>>
    %c0_i32_34 = arith.constant 0 : i32
    %c0_i32_35 = arith.constant 0 : i32
    %44 = tpu.memref_slice %arg5[%c1_i32_30, %c0_i32_34, %c0_i32_35] : memref<2x128x128xbf16, #tpu.memory_space<vmem>> -> memref<1x128x128xbf16, #tpu.memory_space<vmem>>
    %45 = tpu.memref_squeeze %44 : memref<1x128x128xbf16, #tpu.memory_space<vmem>> -> memref<128x128xbf16, #tpu.memory_space<vmem>>
    %46 = tpu.memref_slice %arg6[%c1_i32_31] : memref<2x!tpu.dma_semaphore, #tpu.memory_space<semaphore_mem>> -> memref<1x!tpu.dma_semaphore, #tpu.memory_space<semaphore_mem>>
    %47 = tpu.memref_squeeze %46 : memref<1x!tpu.dma_semaphore, #tpu.memory_space<semaphore_mem>> -> memref<!tpu.dma_semaphore, #tpu.memory_space<semaphore_mem>>
    tpu.wait_dma2 semaphore(%47 : memref<!tpu.dma_semaphore, #tpu.memory_space<semaphore_mem>>) src(%43 : memref<128x128xbf16, #tpu.memory_space<any>>) dst(%45 : memref<128x128xbf16, #tpu.memory_space<vmem>>)
    %c2_i32 = arith.constant 2 : i32
    %c0_i32_36 = arith.constant 0 : i32
    %c0_i32_37 = arith.constant 0 : i32
    %c0_i32_38 = arith.constant 0 : i32
    %c0_i32_39 = arith.constant 0 : i32
    %48 = tpu.memref_slice %arg3[%c2_i32, %c0_i32_38, %c0_i32_39] : memref<8x128x128xbf16, #tpu.memory_space<any>> -> memref<1x128x128xbf16, #tpu.memory_space<any>>
    %49 = tpu.memref_squeeze %48 : memref<1x128x128xbf16, #tpu.memory_space<any>> -> memref<128x128xbf16, #tpu.memory_space<any>>
    %c0_i32_40 = arith.constant 0 : i32
    %c0_i32_41 = arith.constant 0 : i32
    %50 = tpu.memref_slice %arg5[%c0_i32_36, %c0_i32_40, %c0_i32_41] : memref<2x128x128xbf16, #tpu.memory_space<vmem>> -> memref<1x128x128xbf16, #tpu.memory_space<vmem>>
    %51 = tpu.memref_squeeze %50 : memref<1x128x128xbf16, #tpu.memory_space<vmem>> -> memref<128x128xbf16, #tpu.memory_space<vmem>>
    %52 = tpu.memref_slice %arg6[%c0_i32_37] : memref<2x!tpu.dma_semaphore, #tpu.memory_space<semaphore_mem>> -> memref<1x!tpu.dma_semaphore, #tpu.memory_space<semaphore_mem>>
    %53 = tpu.memref_squeeze %52 : memref<1x!tpu.dma_semaphore, #tpu.memory_space<semaphore_mem>> -> memref<!tpu.dma_semaphore, #tpu.memory_space<semaphore_mem>>
    tpu.enqueue_dma source(%49 : memref<128x128xbf16, #tpu.memory_space<any>>) target(%51 : memref<128x128xbf16, #tpu.memory_space<vmem>>) target_semaphore(%53 : memref<!tpu.dma_semaphore, #tpu.memory_space<semaphore_mem>>)
    %c1 = arith.constant 1 : index
    %c0_42 = arith.constant 0 : index
    %54 = vector.load %arg2[%c1, %c0_42] : memref<8x128xf32, #tpu.memory_space<vmem>>, vector<1x128xf32>
    %55 = vector.shape_cast %54 : vector<1x128xf32> to vector<128xf32>
    %c1_43 = arith.constant 1 : index
    %c0_44 = arith.constant 0 : index
    %c0_45 = arith.constant 0 : index
    %56 = vector.load %arg5[%c1_43, %c0_44, %c0_45] : memref<2x128x128xbf16, #tpu.memory_space<vmem>>, vector<1x128x128xbf16>
    %57 = vector.shape_cast %56 : vector<1x128x128xbf16> to vector<128x128xbf16>
    %cst_46 = arith.constant dense<0.000000e+00> : vector<16x128xf32>
    %58 = tpu.matmul %41, %57, %cst_46 {dimension_numbers = #tpu.dot_dimension_numbers<[1], [0], [0], [1], [0, 0, 1, 1], [], []>} : vector<16x128xbf16>, vector<128x128xbf16>, vector<16x128xf32> -> vector<16x128xf32>
    %59 = vector.shape_cast %55 : vector<128xf32> to vector<1x128xf32>
    %60 = vector.broadcast %59 : vector<1x128xf32> to vector<16x128xf32>
    %61 = arith.addf %58, %60 : vector<16x128xf32>
    %cst_47 = arith.constant 2.000000e-01 : f32
    %62 = vector.broadcast %cst_47 : f32 to vector<16x128xf32>
    %63 = arith.mulf %62, %61 : vector<16x128xf32>
    %64 = arith.maximumf %61, %63 : vector<16x128xf32>
    %65 = arith.truncf %64 : vector<16x128xf32> to vector<16x128xbf16>
    %c2_i32_48 = arith.constant 2 : i32
    %c0_i32_49 = arith.constant 0 : i32
    %c0_i32_50 = arith.constant 0 : i32
    %c0_i32_51 = arith.constant 0 : i32
    %c0_i32_52 = arith.constant 0 : i32
    %66 = tpu.memref_slice %arg3[%c2_i32_48, %c0_i32_51, %c0_i32_52] : memref<8x128x128xbf16, #tpu.memory_space<any>> -> memref<1x128x128xbf16, #tpu.memory_space<any>>
    %67 = tpu.memref_squeeze %66 : memref<1x128x128xbf16, #tpu.memory_space<any>> -> memref<128x128xbf16, #tpu.memory_space<any>>
    %c0_i32_53 = arith.constant 0 : i32
    %c0_i32_54 = arith.constant 0 : i32
    %68 = tpu.memref_slice %arg5[%c0_i32_49, %c0_i32_53, %c0_i32_54] : memref<2x128x128xbf16, #tpu.memory_space<vmem>> -> memref<1x128x128xbf16, #tpu.memory_space<vmem>>
    %69 = tpu.memref_squeeze %68 : memref<1x128x128xbf16, #tpu.memory_space<vmem>> -> memref<128x128xbf16, #tpu.memory_space<vmem>>
    %70 = tpu.memref_slice %arg6[%c0_i32_50] : memref<2x!tpu.dma_semaphore, #tpu.memory_space<semaphore_mem>> -> memref<1x!tpu.dma_semaphore, #tpu.memory_space<semaphore_mem>>
    %71 = tpu.memref_squeeze %70 : memref<1x!tpu.dma_semaphore, #tpu.memory_space<semaphore_mem>> -> memref<!tpu.dma_semaphore, #tpu.memory_space<semaphore_mem>>
    tpu.wait_dma2 semaphore(%71 : memref<!tpu.dma_semaphore, #tpu.memory_space<semaphore_mem>>) src(%67 : memref<128x128xbf16, #tpu.memory_space<any>>) dst(%69 : memref<128x128xbf16, #tpu.memory_space<vmem>>)
    %c3_i32 = arith.constant 3 : i32
    %c1_i32_55 = arith.constant 1 : i32
    %c1_i32_56 = arith.constant 1 : i32
    %c0_i32_57 = arith.constant 0 : i32
    %c0_i32_58 = arith.constant 0 : i32
    %72 = tpu.memref_slice %arg3[%c3_i32, %c0_i32_57, %c0_i32_58] : memref<8x128x128xbf16, #tpu.memory_space<any>> -> memref<1x128x128xbf16, #tpu.memory_space<any>>
    %73 = tpu.memref_squeeze %72 : memref<1x128x128xbf16, #tpu.memory_space<any>> -> memref<128x128xbf16, #tpu.memory_space<any>>
    %c0_i32_59 = arith.constant 0 : i32
    %c0_i32_60 = arith.constant 0 : i32
    %74 = tpu.memref_slice %arg5[%c1_i32_55, %c0_i32_59, %c0_i32_60] : memref<2x128x128xbf16, #tpu.memory_space<vmem>> -> memref<1x128x128xbf16, #tpu.memory_space<vmem>>
    %75 = tpu.memref_squeeze %74 : memref<1x128x128xbf16, #tpu.memory_space<vmem>> -> memref<128x128xbf16, #tpu.memory_space<vmem>>
    %76 = tpu.memref_slice %arg6[%c1_i32_56] : memref<2x!tpu.dma_semaphore, #tpu.memory_space<semaphore_mem>> -> memref<1x!tpu.dma_semaphore, #tpu.memory_space<semaphore_mem>>
    %77 = tpu.memref_squeeze %76 : memref<1x!tpu.dma_semaphore, #tpu.memory_space<semaphore_mem>> -> memref<!tpu.dma_semaphore, #tpu.memory_space<semaphore_mem>>
    tpu.enqueue_dma source(%73 : memref<128x128xbf16, #tpu.memory_space<any>>) target(%75 : memref<128x128xbf16, #tpu.memory_space<vmem>>) target_semaphore(%77 : memref<!tpu.dma_semaphore, #tpu.memory_space<semaphore_mem>>)
    %c2 = arith.constant 2 : index
    %c0_61 = arith.constant 0 : index
    %78 = vector.load %arg2[%c2, %c0_61] : memref<8x128xf32, #tpu.memory_space<vmem>>, vector<1x128xf32>
    %79 = vector.shape_cast %78 : vector<1x128xf32> to vector<128xf32>
    %c0_62 = arith.constant 0 : index
    %c0_63 = arith.constant 0 : index
    %c0_64 = arith.constant 0 : index
    %80 = vector.load %arg5[%c0_62, %c0_63, %c0_64] : memref<2x128x128xbf16, #tpu.memory_space<vmem>>, vector<1x128x128xbf16>
    %81 = vector.shape_cast %80 : vector<1x128x128xbf16> to vector<128x128xbf16>
    %cst_65 = arith.constant dense<0.000000e+00> : vector<16x128xf32>
    %82 = tpu.matmul %65, %81, %cst_65 {dimension_numbers = #tpu.dot_dimension_numbers<[1], [0], [0], [1], [0, 0, 1, 1], [], []>} : vector<16x128xbf16>, vector<128x128xbf16>, vector<16x128xf32> -> vector<16x128xf32>
    %83 = vector.shape_cast %79 : vector<128xf32> to vector<1x128xf32>
    %84 = vector.broadcast %83 : vector<1x128xf32> to vector<16x128xf32>
    %85 = arith.addf %82, %84 : vector<16x128xf32>
    %cst_66 = arith.constant 2.000000e-01 : f32
    %86 = vector.broadcast %cst_66 : f32 to vector<16x128xf32>
    %87 = arith.mulf %86, %85 : vector<16x128xf32>
    %88 = arith.maximumf %85, %87 : vector<16x128xf32>
    %89 = arith.truncf %88 : vector<16x128xf32> to vector<16x128xbf16>
    %c3_i32_67 = arith.constant 3 : i32
    %c1_i32_68 = arith.constant 1 : i32
    %c1_i32_69 = arith.constant 1 : i32
    %c0_i32_70 = arith.constant 0 : i32
    %c0_i32_71 = arith.constant 0 : i32
    %90 = tpu.memref_slice %arg3[%c3_i32_67, %c0_i32_70, %c0_i32_71] : memref<8x128x128xbf16, #tpu.memory_space<any>> -> memref<1x128x128xbf16, #tpu.memory_space<any>>
    %91 = tpu.memref_squeeze %90 : memref<1x128x128xbf16, #tpu.memory_space<any>> -> memref<128x128xbf16, #tpu.memory_space<any>>
    %c0_i32_72 = arith.constant 0 : i32
    %c0_i32_73 = arith.constant 0 : i32
    %92 = tpu.memref_slice %arg5[%c1_i32_68, %c0_i32_72, %c0_i32_73] : memref<2x128x128xbf16, #tpu.memory_space<vmem>> -> memref<1x128x128xbf16, #tpu.memory_space<vmem>>
    %93 = tpu.memref_squeeze %92 : memref<1x128x128xbf16, #tpu.memory_space<vmem>> -> memref<128x128xbf16, #tpu.memory_space<vmem>>
    %94 = tpu.memref_slice %arg6[%c1_i32_69] : memref<2x!tpu.dma_semaphore, #tpu.memory_space<semaphore_mem>> -> memref<1x!tpu.dma_semaphore, #tpu.memory_space<semaphore_mem>>
    %95 = tpu.memref_squeeze %94 : memref<1x!tpu.dma_semaphore, #tpu.memory_space<semaphore_mem>> -> memref<!tpu.dma_semaphore, #tpu.memory_space<semaphore_mem>>
    tpu.wait_dma2 semaphore(%95 : memref<!tpu.dma_semaphore, #tpu.memory_space<semaphore_mem>>) src(%91 : memref<128x128xbf16, #tpu.memory_space<any>>) dst(%93 : memref<128x128xbf16, #tpu.memory_space<vmem>>)
    %c4_i32 = arith.constant 4 : i32
    %c0_i32_74 = arith.constant 0 : i32
    %c0_i32_75 = arith.constant 0 : i32
    %c0_i32_76 = arith.constant 0 : i32
    %c0_i32_77 = arith.constant 0 : i32
    %96 = tpu.memref_slice %arg3[%c4_i32, %c0_i32_76, %c0_i32_77] : memref<8x128x128xbf16, #tpu.memory_space<any>> -> memref<1x128x128xbf16, #tpu.memory_space<any>>
    %97 = tpu.memref_squeeze %96 : memref<1x128x128xbf16, #tpu.memory_space<any>> -> memref<128x128xbf16, #tpu.memory_space<any>>
    %c0_i32_78 = arith.constant 0 : i32
    %c0_i32_79 = arith.constant 0 : i32
    %98 = tpu.memref_slice %arg5[%c0_i32_74, %c0_i32_78, %c0_i32_79] : memref<2x128x128xbf16, #tpu.memory_space<vmem>> -> memref<1x128x128xbf16, #tpu.memory_space<vmem>>
    %99 = tpu.memref_squeeze %98 : memref<1x128x128xbf16, #tpu.memory_space<vmem>> -> memref<128x128xbf16, #tpu.memory_space<vmem>>
    %100 = tpu.memref_slice %arg6[%c0_i32_75] : memref<2x!tpu.dma_semaphore, #tpu.memory_space<semaphore_mem>> -> memref<1x!tpu.dma_semaphore, #tpu.memory_space<semaphore_mem>>
    %101 = tpu.memref_squeeze %100 : memref<1x!tpu.dma_semaphore, #tpu.memory_space<semaphore_mem>> -> memref<!tpu.dma_semaphore, #tpu.memory_space<semaphore_mem>>
    tpu.enqueue_dma source(%97 : memref<128x128xbf16, #tpu.memory_space<any>>) target(%99 : memref<128x128xbf16, #tpu.memory_space<vmem>>) target_semaphore(%101 : memref<!tpu.dma_semaphore, #tpu.memory_space<semaphore_mem>>)
    %c3 = arith.constant 3 : index
    %c0_80 = arith.constant 0 : index
    %102 = vector.load %arg2[%c3, %c0_80] : memref<8x128xf32, #tpu.memory_space<vmem>>, vector<1x128xf32>
    %103 = vector.shape_cast %102 : vector<1x128xf32> to vector<128xf32>
    %c1_81 = arith.constant 1 : index
    %c0_82 = arith.constant 0 : index
    %c0_83 = arith.constant 0 : index
    %104 = vector.load %arg5[%c1_81, %c0_82, %c0_83] : memref<2x128x128xbf16, #tpu.memory_space<vmem>>, vector<1x128x128xbf16>
    %105 = vector.shape_cast %104 : vector<1x128x128xbf16> to vector<128x128xbf16>
    %cst_84 = arith.constant dense<0.000000e+00> : vector<16x128xf32>
    %106 = tpu.matmul %89, %105, %cst_84 {dimension_numbers = #tpu.dot_dimension_numbers<[1], [0], [0], [1], [0, 0, 1, 1], [], []>} : vector<16x128xbf16>, vector<128x128xbf16>, vector<16x128xf32> -> vector<16x128xf32>
    %107 = vector.shape_cast %103 : vector<128xf32> to vector<1x128xf32>
    %108 = vector.broadcast %107 : vector<1x128xf32> to vector<16x128xf32>
    %109 = arith.addf %106, %108 : vector<16x128xf32>
    %cst_85 = arith.constant 2.000000e-01 : f32
    %110 = vector.broadcast %cst_85 : f32 to vector<16x128xf32>
    %111 = arith.mulf %110, %109 : vector<16x128xf32>
    %112 = arith.maximumf %109, %111 : vector<16x128xf32>
    %113 = arith.truncf %112 : vector<16x128xf32> to vector<16x128xbf16>
    %c4_i32_86 = arith.constant 4 : i32
    %c0_i32_87 = arith.constant 0 : i32
    %c0_i32_88 = arith.constant 0 : i32
    %c0_i32_89 = arith.constant 0 : i32
    %c0_i32_90 = arith.constant 0 : i32
    %114 = tpu.memref_slice %arg3[%c4_i32_86, %c0_i32_89, %c0_i32_90] : memref<8x128x128xbf16, #tpu.memory_space<any>> -> memref<1x128x128xbf16, #tpu.memory_space<any>>
    %115 = tpu.memref_squeeze %114 : memref<1x128x128xbf16, #tpu.memory_space<any>> -> memref<128x128xbf16, #tpu.memory_space<any>>
    %c0_i32_91 = arith.constant 0 : i32
    %c0_i32_92 = arith.constant 0 : i32
    %116 = tpu.memref_slice %arg5[%c0_i32_87, %c0_i32_91, %c0_i32_92] : memref<2x128x128xbf16, #tpu.memory_space<vmem>> -> memref<1x128x128xbf16, #tpu.memory_space<vmem>>
    %117 = tpu.memref_squeeze %116 : memref<1x128x128xbf16, #tpu.memory_space<vmem>> -> memref<128x128xbf16, #tpu.memory_space<vmem>>
    %118 = tpu.memref_slice %arg6[%c0_i32_88] : memref<2x!tpu.dma_semaphore, #tpu.memory_space<semaphore_mem>> -> memref<1x!tpu.dma_semaphore, #tpu.memory_space<semaphore_mem>>
    %119 = tpu.memref_squeeze %118 : memref<1x!tpu.dma_semaphore, #tpu.memory_space<semaphore_mem>> -> memref<!tpu.dma_semaphore, #tpu.memory_space<semaphore_mem>>
    tpu.wait_dma2 semaphore(%119 : memref<!tpu.dma_semaphore, #tpu.memory_space<semaphore_mem>>) src(%115 : memref<128x128xbf16, #tpu.memory_space<any>>) dst(%117 : memref<128x128xbf16, #tpu.memory_space<vmem>>)
    %c5_i32 = arith.constant 5 : i32
    %c1_i32_93 = arith.constant 1 : i32
    %c1_i32_94 = arith.constant 1 : i32
    %c0_i32_95 = arith.constant 0 : i32
    %c0_i32_96 = arith.constant 0 : i32
    %120 = tpu.memref_slice %arg3[%c5_i32, %c0_i32_95, %c0_i32_96] : memref<8x128x128xbf16, #tpu.memory_space<any>> -> memref<1x128x128xbf16, #tpu.memory_space<any>>
    %121 = tpu.memref_squeeze %120 : memref<1x128x128xbf16, #tpu.memory_space<any>> -> memref<128x128xbf16, #tpu.memory_space<any>>
    %c0_i32_97 = arith.constant 0 : i32
    %c0_i32_98 = arith.constant 0 : i32
    %122 = tpu.memref_slice %arg5[%c1_i32_93, %c0_i32_97, %c0_i32_98] : memref<2x128x128xbf16, #tpu.memory_space<vmem>> -> memref<1x128x128xbf16, #tpu.memory_space<vmem>>
    %123 = tpu.memref_squeeze %122 : memref<1x128x128xbf16, #tpu.memory_space<vmem>> -> memref<128x128xbf16, #tpu.memory_space<vmem>>
    %124 = tpu.memref_slice %arg6[%c1_i32_94] : memref<2x!tpu.dma_semaphore, #tpu.memory_space<semaphore_mem>> -> memref<1x!tpu.dma_semaphore, #tpu.memory_space<semaphore_mem>>
    %125 = tpu.memref_squeeze %124 : memref<1x!tpu.dma_semaphore, #tpu.memory_space<semaphore_mem>> -> memref<!tpu.dma_semaphore, #tpu.memory_space<semaphore_mem>>
    tpu.enqueue_dma source(%121 : memref<128x128xbf16, #tpu.memory_space<any>>) target(%123 : memref<128x128xbf16, #tpu.memory_space<vmem>>) target_semaphore(%125 : memref<!tpu.dma_semaphore, #tpu.memory_space<semaphore_mem>>)
    %c4 = arith.constant 4 : index
    %c0_99 = arith.constant 0 : index
    %126 = vector.load %arg2[%c4, %c0_99] : memref<8x128xf32, #tpu.memory_space<vmem>>, vector<1x128xf32>
    %127 = vector.shape_cast %126 : vector<1x128xf32> to vector<128xf32>
    %c0_100 = arith.constant 0 : index
    %c0_101 = arith.constant 0 : index
    %c0_102 = arith.constant 0 : index
    %128 = vector.load %arg5[%c0_100, %c0_101, %c0_102] : memref<2x128x128xbf16, #tpu.memory_space<vmem>>, vector<1x128x128xbf16>
    %129 = vector.shape_cast %128 : vector<1x128x128xbf16> to vector<128x128xbf16>
    %cst_103 = arith.constant dense<0.000000e+00> : vector<16x128xf32>
    %130 = tpu.matmul %113, %129, %cst_103 {dimension_numbers = #tpu.dot_dimension_numbers<[1], [0], [0], [1], [0, 0, 1, 1], [], []>} : vector<16x128xbf16>, vector<128x128xbf16>, vector<16x128xf32> -> vector<16x128xf32>
    %131 = vector.shape_cast %127 : vector<128xf32> to vector<1x128xf32>
    %132 = vector.broadcast %131 : vector<1x128xf32> to vector<16x128xf32>
    %133 = arith.addf %130, %132 : vector<16x128xf32>
    %cst_104 = arith.constant 2.000000e-01 : f32
    %134 = vector.broadcast %cst_104 : f32 to vector<16x128xf32>
    %135 = arith.mulf %134, %133 : vector<16x128xf32>
    %136 = arith.maximumf %133, %135 : vector<16x128xf32>
    %137 = arith.truncf %136 : vector<16x128xf32> to vector<16x128xbf16>
    %c5_i32_105 = arith.constant 5 : i32
    %c1_i32_106 = arith.constant 1 : i32
    %c1_i32_107 = arith.constant 1 : i32
    %c0_i32_108 = arith.constant 0 : i32
    %c0_i32_109 = arith.constant 0 : i32
    %138 = tpu.memref_slice %arg3[%c5_i32_105, %c0_i32_108, %c0_i32_109] : memref<8x128x128xbf16, #tpu.memory_space<any>> -> memref<1x128x128xbf16, #tpu.memory_space<any>>
    %139 = tpu.memref_squeeze %138 : memref<1x128x128xbf16, #tpu.memory_space<any>> -> memref<128x128xbf16, #tpu.memory_space<any>>
    %c0_i32_110 = arith.constant 0 : i32
    %c0_i32_111 = arith.constant 0 : i32
    %140 = tpu.memref_slice %arg5[%c1_i32_106, %c0_i32_110, %c0_i32_111] : memref<2x128x128xbf16, #tpu.memory_space<vmem>> -> memref<1x128x128xbf16, #tpu.memory_space<vmem>>
    %141 = tpu.memref_squeeze %140 : memref<1x128x128xbf16, #tpu.memory_space<vmem>> -> memref<128x128xbf16, #tpu.memory_space<vmem>>
    %142 = tpu.memref_slice %arg6[%c1_i32_107] : memref<2x!tpu.dma_semaphore, #tpu.memory_space<semaphore_mem>> -> memref<1x!tpu.dma_semaphore, #tpu.memory_space<semaphore_mem>>
    %143 = tpu.memref_squeeze %142 : memref<1x!tpu.dma_semaphore, #tpu.memory_space<semaphore_mem>> -> memref<!tpu.dma_semaphore, #tpu.memory_space<semaphore_mem>>
    tpu.wait_dma2 semaphore(%143 : memref<!tpu.dma_semaphore, #tpu.memory_space<semaphore_mem>>) src(%139 : memref<128x128xbf16, #tpu.memory_space<any>>) dst(%141 : memref<128x128xbf16, #tpu.memory_space<vmem>>)
    %c6_i32 = arith.constant 6 : i32
    %c0_i32_112 = arith.constant 0 : i32
    %c0_i32_113 = arith.constant 0 : i32
    %c0_i32_114 = arith.constant 0 : i32
    %c0_i32_115 = arith.constant 0 : i32
    %144 = tpu.memref_slice %arg3[%c6_i32, %c0_i32_114, %c0_i32_115] : memref<8x128x128xbf16, #tpu.memory_space<any>> -> memref<1x128x128xbf16, #tpu.memory_space<any>>
    %145 = tpu.memref_squeeze %144 : memref<1x128x128xbf16, #tpu.memory_space<any>> -> memref<128x128xbf16, #tpu.memory_space<any>>
    %c0_i32_116 = arith.constant 0 : i32
    %c0_i32_117 = arith.constant 0 : i32
    %146 = tpu.memref_slice %arg5[%c0_i32_112, %c0_i32_116, %c0_i32_117] : memref<2x128x128xbf16, #tpu.memory_space<vmem>> -> memref<1x128x128xbf16, #tpu.memory_space<vmem>>
    %147 = tpu.memref_squeeze %146 : memref<1x128x128xbf16, #tpu.memory_space<vmem>> -> memref<128x128xbf16, #tpu.memory_space<vmem>>
    %148 = tpu.memref_slice %arg6[%c0_i32_113] : memref<2x!tpu.dma_semaphore, #tpu.memory_space<semaphore_mem>> -> memref<1x!tpu.dma_semaphore, #tpu.memory_space<semaphore_mem>>
    %149 = tpu.memref_squeeze %148 : memref<1x!tpu.dma_semaphore, #tpu.memory_space<semaphore_mem>> -> memref<!tpu.dma_semaphore, #tpu.memory_space<semaphore_mem>>
    tpu.enqueue_dma source(%145 : memref<128x128xbf16, #tpu.memory_space<any>>) target(%147 : memref<128x128xbf16, #tpu.memory_space<vmem>>) target_semaphore(%149 : memref<!tpu.dma_semaphore, #tpu.memory_space<semaphore_mem>>)
    %c5 = arith.constant 5 : index
    %c0_118 = arith.constant 0 : index
    %150 = vector.load %arg2[%c5, %c0_118] : memref<8x128xf32, #tpu.memory_space<vmem>>, vector<1x128xf32>
    %151 = vector.shape_cast %150 : vector<1x128xf32> to vector<128xf32>
    %c1_119 = arith.constant 1 : index
    %c0_120 = arith.constant 0 : index
    %c0_121 = arith.constant 0 : index
    %152 = vector.load %arg5[%c1_119, %c0_120, %c0_121] : memref<2x128x128xbf16, #tpu.memory_space<vmem>>, vector<1x128x128xbf16>
    %153 = vector.shape_cast %152 : vector<1x128x128xbf16> to vector<128x128xbf16>
    %cst_122 = arith.constant dense<0.000000e+00> : vector<16x128xf32>
    %154 = tpu.matmul %137, %153, %cst_122 {dimension_numbers = #tpu.dot_dimension_numbers<[1], [0], [0], [1], [0, 0, 1, 1], [], []>} : vector<16x128xbf16>, vector<128x128xbf16>, vector<16x128xf32> -> vector<16x128xf32>
    %155 = vector.shape_cast %151 : vector<128xf32> to vector<1x128xf32>
    %156 = vector.broadcast %155 : vector<1x128xf32> to vector<16x128xf32>
    %157 = arith.addf %154, %156 : vector<16x128xf32>
    %cst_123 = arith.constant 2.000000e-01 : f32
    %158 = vector.broadcast %cst_123 : f32 to vector<16x128xf32>
    %159 = arith.mulf %158, %157 : vector<16x128xf32>
    %160 = arith.maximumf %157, %159 : vector<16x128xf32>
    %161 = arith.truncf %160 : vector<16x128xf32> to vector<16x128xbf16>
    %c6_i32_124 = arith.constant 6 : i32
    %c0_i32_125 = arith.constant 0 : i32
    %c0_i32_126 = arith.constant 0 : i32
    %c0_i32_127 = arith.constant 0 : i32
    %c0_i32_128 = arith.constant 0 : i32
    %162 = tpu.memref_slice %arg3[%c6_i32_124, %c0_i32_127, %c0_i32_128] : memref<8x128x128xbf16, #tpu.memory_space<any>> -> memref<1x128x128xbf16, #tpu.memory_space<any>>
    %163 = tpu.memref_squeeze %162 : memref<1x128x128xbf16, #tpu.memory_space<any>> -> memref<128x128xbf16, #tpu.memory_space<any>>
    %c0_i32_129 = arith.constant 0 : i32
    %c0_i32_130 = arith.constant 0 : i32
    %164 = tpu.memref_slice %arg5[%c0_i32_125, %c0_i32_129, %c0_i32_130] : memref<2x128x128xbf16, #tpu.memory_space<vmem>> -> memref<1x128x128xbf16, #tpu.memory_space<vmem>>
    %165 = tpu.memref_squeeze %164 : memref<1x128x128xbf16, #tpu.memory_space<vmem>> -> memref<128x128xbf16, #tpu.memory_space<vmem>>
    %166 = tpu.memref_slice %arg6[%c0_i32_126] : memref<2x!tpu.dma_semaphore, #tpu.memory_space<semaphore_mem>> -> memref<1x!tpu.dma_semaphore, #tpu.memory_space<semaphore_mem>>
    %167 = tpu.memref_squeeze %166 : memref<1x!tpu.dma_semaphore, #tpu.memory_space<semaphore_mem>> -> memref<!tpu.dma_semaphore, #tpu.memory_space<semaphore_mem>>
    tpu.wait_dma2 semaphore(%167 : memref<!tpu.dma_semaphore, #tpu.memory_space<semaphore_mem>>) src(%163 : memref<128x128xbf16, #tpu.memory_space<any>>) dst(%165 : memref<128x128xbf16, #tpu.memory_space<vmem>>)
    %c7_i32 = arith.constant 7 : i32
    %c1_i32_131 = arith.constant 1 : i32
    %c1_i32_132 = arith.constant 1 : i32
    %c0_i32_133 = arith.constant 0 : i32
    %c0_i32_134 = arith.constant 0 : i32
    %168 = tpu.memref_slice %arg3[%c7_i32, %c0_i32_133, %c0_i32_134] : memref<8x128x128xbf16, #tpu.memory_space<any>> -> memref<1x128x128xbf16, #tpu.memory_space<any>>
    %169 = tpu.memref_squeeze %168 : memref<1x128x128xbf16, #tpu.memory_space<any>> -> memref<128x128xbf16, #tpu.memory_space<any>>
    %c0_i32_135 = arith.constant 0 : i32
    %c0_i32_136 = arith.constant 0 : i32
    %170 = tpu.memref_slice %arg5[%c1_i32_131, %c0_i32_135, %c0_i32_136] : memref<2x128x128xbf16, #tpu.memory_space<vmem>> -> memref<1x128x128xbf16, #tpu.memory_space<vmem>>
    %171 = tpu.memref_squeeze %170 : memref<1x128x128xbf16, #tpu.memory_space<vmem>> -> memref<128x128xbf16, #tpu.memory_space<vmem>>
    %172 = tpu.memref_slice %arg6[%c1_i32_132] : memref<2x!tpu.dma_semaphore, #tpu.memory_space<semaphore_mem>> -> memref<1x!tpu.dma_semaphore, #tpu.memory_space<semaphore_mem>>
    %173 = tpu.memref_squeeze %172 : memref<1x!tpu.dma_semaphore, #tpu.memory_space<semaphore_mem>> -> memref<!tpu.dma_semaphore, #tpu.memory_space<semaphore_mem>>
    tpu.enqueue_dma source(%169 : memref<128x128xbf16, #tpu.memory_space<any>>) target(%171 : memref<128x128xbf16, #tpu.memory_space<vmem>>) target_semaphore(%173 : memref<!tpu.dma_semaphore, #tpu.memory_space<semaphore_mem>>)
    %c6 = arith.constant 6 : index
    %c0_137 = arith.constant 0 : index
    %174 = vector.load %arg2[%c6, %c0_137] : memref<8x128xf32, #tpu.memory_space<vmem>>, vector<1x128xf32>
    %175 = vector.shape_cast %174 : vector<1x128xf32> to vector<128xf32>
    %c0_138 = arith.constant 0 : index
    %c0_139 = arith.constant 0 : index
    %c0_140 = arith.constant 0 : index
    %176 = vector.load %arg5[%c0_138, %c0_139, %c0_140] : memref<2x128x128xbf16, #tpu.memory_space<vmem>>, vector<1x128x128xbf16>
    %177 = vector.shape_cast %176 : vector<1x128x128xbf16> to vector<128x128xbf16>
    %cst_141 = arith.constant dense<0.000000e+00> : vector<16x128xf32>
    %178 = tpu.matmul %161, %177, %cst_141 {dimension_numbers = #tpu.dot_dimension_numbers<[1], [0], [0], [1], [0, 0, 1, 1], [], []>} : vector<16x128xbf16>, vector<128x128xbf16>, vector<16x128xf32> -> vector<16x128xf32>
    %179 = vector.shape_cast %175 : vector<128xf32> to vector<1x128xf32>
    %180 = vector.broadcast %179 : vector<1x128xf32> to vector<16x128xf32>
    %181 = arith.addf %178, %180 : vector<16x128xf32>
    %cst_142 = arith.constant 2.000000e-01 : f32
    %182 = vector.broadcast %cst_142 : f32 to vector<16x128xf32>
    %183 = arith.mulf %182, %181 : vector<16x128xf32>
    %184 = arith.maximumf %181, %183 : vector<16x128xf32>
    %185 = arith.truncf %184 : vector<16x128xf32> to vector<16x128xbf16>
    %c7_i32_143 = arith.constant 7 : i32
    %c1_i32_144 = arith.constant 1 : i32
    %c1_i32_145 = arith.constant 1 : i32
    %c0_i32_146 = arith.constant 0 : i32
    %c0_i32_147 = arith.constant 0 : i32
    %186 = tpu.memref_slice %arg3[%c7_i32_143, %c0_i32_146, %c0_i32_147] : memref<8x128x128xbf16, #tpu.memory_space<any>> -> memref<1x128x128xbf16, #tpu.memory_space<any>>
    %187 = tpu.memref_squeeze %186 : memref<1x128x128xbf16, #tpu.memory_space<any>> -> memref<128x128xbf16, #tpu.memory_space<any>>
    %c0_i32_148 = arith.constant 0 : i32
    %c0_i32_149 = arith.constant 0 : i32
    %188 = tpu.memref_slice %arg5[%c1_i32_144, %c0_i32_148, %c0_i32_149] : memref<2x128x128xbf16, #tpu.memory_space<vmem>> -> memref<1x128x128xbf16, #tpu.memory_space<vmem>>
    %189 = tpu.memref_squeeze %188 : memref<1x128x128xbf16, #tpu.memory_space<vmem>> -> memref<128x128xbf16, #tpu.memory_space<vmem>>
    %190 = tpu.memref_slice %arg6[%c1_i32_145] : memref<2x!tpu.dma_semaphore, #tpu.memory_space<semaphore_mem>> -> memref<1x!tpu.dma_semaphore, #tpu.memory_space<semaphore_mem>>
    %191 = tpu.memref_squeeze %190 : memref<1x!tpu.dma_semaphore, #tpu.memory_space<semaphore_mem>> -> memref<!tpu.dma_semaphore, #tpu.memory_space<semaphore_mem>>
    tpu.wait_dma2 semaphore(%191 : memref<!tpu.dma_semaphore, #tpu.memory_space<semaphore_mem>>) src(%187 : memref<128x128xbf16, #tpu.memory_space<any>>) dst(%189 : memref<128x128xbf16, #tpu.memory_space<vmem>>)
    %c7 = arith.constant 7 : index
    %c0_150 = arith.constant 0 : index
    %192 = vector.load %arg2[%c7, %c0_150] : memref<8x128xf32, #tpu.memory_space<vmem>>, vector<1x128xf32>
    %193 = vector.shape_cast %192 : vector<1x128xf32> to vector<128xf32>
    %c1_151 = arith.constant 1 : index
    %c0_152 = arith.constant 0 : index
    %c0_153 = arith.constant 0 : index
    %194 = vector.load %arg5[%c1_151, %c0_152, %c0_153] : memref<2x128x128xbf16, #tpu.memory_space<vmem>>, vector<1x128x128xbf16>
    %195 = vector.shape_cast %194 : vector<1x128x128xbf16> to vector<128x128xbf16>
    %cst_154 = arith.constant dense<0.000000e+00> : vector<16x128xf32>
    %196 = tpu.matmul %185, %195, %cst_154 {dimension_numbers = #tpu.dot_dimension_numbers<[1], [0], [0], [1], [0, 0, 1, 1], [], []>} : vector<16x128xbf16>, vector<128x128xbf16>, vector<16x128xf32> -> vector<16x128xf32>
    %197 = vector.shape_cast %193 : vector<128xf32> to vector<1x128xf32>
    %198 = vector.broadcast %197 : vector<1x128xf32> to vector<16x128xf32>
    %199 = arith.addf %196, %198 : vector<16x128xf32>
    %cst_155 = arith.constant 2.000000e-01 : f32
    %200 = vector.broadcast %cst_155 : f32 to vector<16x128xf32>
    %201 = arith.mulf %200, %199 : vector<16x128xf32>
    %202 = arith.maximumf %199, %201 : vector<16x128xf32>
    %c0_156 = arith.constant 0 : index
    %c0_157 = arith.constant 0 : index
    %203 = vector.load %arg4[%c0_156, %c0_157] : memref<16x128xf32, #tpu.memory_space<vmem>>, vector<16x128xf32>
    tpu.vector_store %arg4[%c0_156, %c0_157], %202 {strides = array<i32>} : memref<16x128xf32, #tpu.memory_space<vmem>>, vector<16x128xf32>,
    return
  }
  func.func @transform_0(%arg0: i32) -> (i32, i32) {
    %c0_i32 = arith.constant 0 : i32
    %c0_i32_0 = arith.constant 0 : i32
    %c0_i32_1 = arith.constant 0 : i32
    return %c0_i32, %c0_i32_0 : i32, i32
  }
  func.func @transform_1(%arg0: i32) -> (i32, i32) {
    %c0_i32 = arith.constant 0 : i32
    %c0_i32_0 = arith.constant 0 : i32
    %c0_i32_1 = arith.constant 0 : i32
    return %c0_i32, %c0_i32_0 : i32, i32
  }
  func.func @transform_3(%arg0: i32) -> (i32, i32) {
    %c0_i32 = arith.constant 0 : i32
    %c0_i32_0 = arith.constant 0 : i32
    %c0_i32_1 = arith.constant 0 : i32
    return %c0_i32, %c0_i32_0 : i32, i32
  }
}

</mosaic_0001>

<llo_original>
// kernel: tpu_custom_call.1
$region0: #{tpu_custom_call.1}
  #allocation0 [shape = 'u32[]', space=smem, size = 0x4, offset = 0x4, fixed_abs, tag = 'smem constant byte address 0x4 - core index']
  #allocation1 [shape = 'u32[144,128]{1,0:T(1,128)}', space=vmem, size = 0x12000, scoped, tag = 'internal scratch']
  #allocation2 [shape = 'bf16[2,128,128]{2,1,0:T(8,128)(2,1)}', space=vmem, size = 0x10000, scoped, tag = 'scratch operand']
  #allocation3 [shape = 's32[2]{0}', space=sflag, size = 0x8, scoped, tag = 'scratch operand']
  #allocation10 [shape = 's32[]', space=sflag, size = 0x4, offset = 0, fixed_abs, tag = 'sflag constant byte address 0x0 - dummy sync flag']
  #allocation11 [shape = 's32[]', space=sflag, size = 0x4, offset = 0, fixed_abs, tag = 'sflag constant byte address 0x0 - dummy sync flag']
  #allocation12 [shape = 'u32[]', space=smem, size = 0x4, offset = 0x44, fixed_abs, tag = 'smem constant byte address 0x44 - assertion arg 0']
  #allocation13 [shape = 'u32[]', space=smem, size = 0x4, offset = 0x48, fixed_abs, tag = 'smem constant byte address 0x48 - assertion arg 1']
  #allocation14 [shape = 's32[]', space=sflag, size = 0x4, offset = 0, fixed_abs, tag = 'sflag constant byte address 0x0 - dummy sync flag']
  #allocation15 [shape = 's32[]', space=sflag, size = 0x4, offset = 0, fixed_abs, tag = 'sflag constant byte address 0x0 - dummy sync flag']
  #allocation16 [shape = 's32[]', space=sflag, size = 0x4, offset = 0, fixed_abs, tag = 'sflag constant byte address 0x0 - dummy sync flag']
  #allocation17 [shape = 's32[]', space=sflag, size = 0x4, offset = 0, fixed_abs, tag = 'sflag constant byte address 0x0 - dummy sync flag']
  #allocation18 [shape = 's32[]', space=sflag, size = 0x4, offset = 0, fixed_abs, tag = 'sflag constant byte address 0x0 - dummy sync flag']
  #allocation19 [shape = 's32[]', space=sflag, size = 0x4, offset = 0, fixed_abs, tag = 'sflag constant byte address 0x0 - dummy sync flag']
  #allocation20 [shape = 's32[]', space=sflag, size = 0x4, offset = 0, fixed_abs, tag = 'sflag constant byte address 0x0 - dummy sync flag']
  #allocation21 [shape = 's32[]', space=sflag, size = 0x4, offset = 0, fixed_abs, tag = 'sflag constant byte address 0x0 - dummy sync flag']
  #allocation22 [shape = 's32[]', space=sflag, size = 0x4, offset = 0, fixed_abs, tag = 'sflag constant byte address 0x0 - dummy sync flag']
  #allocation23 [shape = 's32[]', space=sflag, size = 0x4, offset = 0, fixed_abs, tag = 'sflag constant byte address 0x0 - dummy sync flag']
  #allocation24 [shape = 's32[]', space=sflag, size = 0x4, offset = 0, fixed_abs, tag = 'sflag constant byte address 0x0 - dummy sync flag']
  #allocation25 [shape = 's32[]', space=sflag, size = 0x4, offset = 0, fixed_abs, tag = 'sflag constant byte address 0x0 - dummy sync flag']
  #allocation26 [shape = 's32[]', space=sflag, size = 0x4, offset = 0, fixed_abs, tag = 'sflag constant byte address 0x0 - dummy sync flag']
  #allocation27 [shape = 's32[]', space=sflag, size = 0x4, offset = 0, fixed_abs, tag = 'sflag constant byte address 0x0 - dummy sync flag']
  %s0 = inlined_call_operand.hbm [shape: f32[16,128], index: 0, kind: input, shape index: {}]
  %s1 = inlined_call_operand.hbm [shape: f32[8,128], index: 1, kind: input, shape index: {}]
  %s2 = inlined_call_operand.hbm [shape: bf16[8,128,128], index: 2, kind: input, shape index: {}]
  %s3 = inlined_call_operand.hbm [shape: f32[16,128], index: 3, kind: output, shape index: {}]
  %s4 = sld [smem:[#allocation0]]
  $region58: #{tpu_custom_call.1} parent=0
    _
  %s6 = ssub.s32 1, %s4
  %s7 = scalar_select 0, %s6, %s4
  $region1: #{tpu_custom_call.1} parent=0
    #allocation4 [shape = 'u8[8192]{0}', space=vmem, size = 0x2000, scoped, tag = 'input window, operand 0, single buffered']
    #allocation5 [shape = 's32[1]{0}', space=sflag, size = 0x4, scoped, tag = 'scoped memory for tpu_custom_call.1']
    #allocation6 [shape = 's32[1]{0}', space=sflag, size = 0x4, scoped, tag = 'scoped memory for tpu_custom_call.1']
    #allocation7 [shape = 'u8[4096]{0}', space=vmem, size = 0x1000, scoped, tag = 'input window, operand 1, single buffered']
    #allocation8 [shape = 's32[1]{0}', space=sflag, size = 0x4, scoped, tag = 'scoped memory for tpu_custom_call.1']
    #allocation9 [shape = 'u8[8192]{0}', space=vmem, size = 0x2000, scoped, tag = 'output window, operand 0, single buffered']
    %8 = vsyncpa [#allocation5], 0
    %9 = vsyncpa [#allocation8], 0
    %10 = vsyncpa [#allocation6], 0
    // Predicated region
    $region2: #{tpu_custom_call.1} parent=1 // pred_check
      _
    $region3: #{tpu_custom_call.1} parent=1 // pred_check_branch
      %12 = sbr.rel (0) target = $region5
    $region4: #{tpu_custom_call.1} parent=1 // pred_region
      %s14 = ssub.s32 256, 256
      %15 = vsyncadd [#allocation5], %s14
      %s16 = sshll.u32 [#allocation4], 4
      %s17 = int_to_ptr.vmem [resolvable:$true] %s16
      %22 = dma.hbm_to_vmem [thread:$0]  %s0, 256, %s17, [#allocation5], 128, 128, 8
    $region5: #{tpu_custom_call.1} parent=1 // pred_fallthru
      _
    // Predicated region
    $region6: #{tpu_custom_call.1} parent=1 // pred_check
      _
    $region7: #{tpu_custom_call.1} parent=1 // pred_check_branch
      %24 = sbr.rel (0) target = $region9
    $region8: #{tpu_custom_call.1} parent=1 // pred_region
      %s26 = ssub.s32 128, 128
      %27 = vsyncadd [#allocation8], %s26
      %s29 = sshll.u32 [#allocation7], 4
      %s30 = int_to_ptr.vmem [resolvable:$true] %s29
      %32 = dma.hbm_to_vmem [thread:$0]  %s1, 128, %s30, [#allocation8]
    $region9: #{tpu_custom_call.1} parent=1 // pred_fallthru
      _
    // Predicated region
    $region10: #{tpu_custom_call.1} parent=1 // pred_check
      _
    $region11: #{tpu_custom_call.1} parent=1 // pred_check_branch
      %34 = sbr.rel (0) target = $region13
    $region12: #{tpu_custom_call.1} parent=1 // pred_region
      %35 = dma.done [#allocation5], 256
    $region13: #{tpu_custom_call.1} parent=1 // pred_fallthru
      _
    // Predicated region
    $region14: #{tpu_custom_call.1} parent=1 // pred_check
      _
    $region15: #{tpu_custom_call.1} parent=1 // pred_check_branch
      %37 = sbr.rel (0) target = $region17
    $region16: #{tpu_custom_call.1} parent=1 // pred_region
      %38 = dma.done [#allocation8], 128
    $region17: #{tpu_custom_call.1} parent=1 // pred_fallthru
      _
    // Predicated region
    $region18: #{tpu_custom_call.1} parent=1 // pred_check
      _
    $region19: #{tpu_custom_call.1} parent=1 // pred_check_branch
      %41 = sbr.rel target = $region21
    $region20: #{tpu_custom_call.1} parent=1 // pred_region
      %42 = sst [smem:[#allocation12]] [#allocation11]
      %43 = sst [smem:[#allocation13]] [#allocation10]
    $region21: #{tpu_custom_call.1} parent=1 // pred_fallthru
      _
    %45 = shalt.err (0)
    %s47 = sshll.u32 [#allocation2], 4
    %s48 = int_to_ptr.vmem [resolvable:$true] %s47
    %50 = dma.hbm_to_vmem [thread:$0]  %s2, 1024, %s48, [#allocation3]
    %v51 = vld [vmem:[#allocation4] sm:$0xff]
    %v52 = vld [vmem:[#allocation4 + $0x8] sm:$0xff]
    %v53 = vmul.f32 %v51, %v51
    %v54 = vmul.f32 %v52, %v52
    %55 = vadd.xlane.f32.xlu0 %v53
    %v56 = vpop.xlane.xlu0 %55
    %57 = vadd.xlane.f32.xlu0 %v54
    %v58 = vpop.xlane.xlu0 %57
    %v59 = vrcp.pop 128.0
    %v60 = vmul.f32 %v56, %v59
    %v61 = vmul.f32 %v58, %v59
    %v62 = vadd.f32 %v60, 1e-08
    %v63 = vadd.f32 %v61, 1e-08
    %v64 = vrsqrt.pop %v62
    %v65 = vrsqrt.pop %v63
    %v66 = vmul.f32 %v51, %v64
    %v67 = vmul.f32 %v52, %v65
    %v68 = vpack.c.bf16 %v67, %v66
    %s69 = smul.u32 4, 16
    %s70 = smul.u32 %s69, 1
    %s71 = sshll.u32 %s70, 4
    %72 = dma.done [#allocation3], %s71
    %s73 = scalar_lea.hbm %s2, 1024
    %s74 = scalar_lea.vmem [#allocation2], 64
    %s75 = scalar_lea.sflag [#allocation3], 1
    // Predicated region
    $region22: #{tpu_custom_call.1} parent=1 // pred_check
      _
    $region23: #{tpu_custom_call.1} parent=1 // pred_check_branch
      %77 = sbr.rel target = $region25
    $region24: #{tpu_custom_call.1} parent=1 // pred_region
      %78 = sst [smem:[#allocation12]] [#allocation15]
      %79 = sst [smem:[#allocation13]] [#allocation14]
    $region25: #{tpu_custom_call.1} parent=1 // pred_fallthru
      _
    %81 = shalt.err (0)
    %s83 = sshll.u32 %s74, 4
    %s84 = int_to_ptr.vmem [resolvable:$true] %s83
    %86 = dma.hbm_to_vmem [thread:$0]  %s73, 1024, %s84, %s75
    %v87 = vld [vmem:[#allocation7] sm:$0x1]
    %v88 = vld [vmem:[#allocation2] sm:$0xf]
    %v89 = vld [vmem:[#allocation2 + $0x4] sm:$0xf]
    %v90 = vld [vmem:[#allocation2 + $0x8] sm:$0xf]
    %v91 = vld [vmem:[#allocation2 + $0xc] sm:$0xf]
    %v92 = vld [vmem:[#allocation2 + $0x10] sm:$0xf]
    %v93 = vld [vmem:[#allocation2 + $0x14] sm:$0xf]
    %v94 = vld [vmem:[#allocation2 + $0x18] sm:$0xf]
    %v95 = vld [vmem:[#allocation2 + $0x1c] sm:$0xf]
    %v96 = vld [vmem:[#allocation2 + $0x20] sm:$0xf]
    %v97 = vld [vmem:[#allocation2 + $0x24] sm:$0xf]
    %v98 = vld [vmem:[#allocation2 + $0x28] sm:$0xf]
    %v99 = vld [vmem:[#allocation2 + $0x2c] sm:$0xf]
    %v100 = vld [vmem:[#allocation2 + $0x30] sm:$0xf]
    %v101 = vld [vmem:[#allocation2 + $0x34] sm:$0xf]
    %v102 = vld [vmem:[#allocation2 + $0x38] sm:$0xf]
    %v103 = vld [vmem:[#allocation2 + $0x3c] sm:$0xf]
    %v104 = vlaneseq
    %v105 = vshrl.u32 %v104, 7
    %v106 = vsub.s32 0, %v105
    %v107 = vrot.slane %v87, %v106
    %v124 = vunpack.c.l.b16 %v88
    %v125 = vunpack.c.l.b16 %v89
    %v126 = vunpack.c.l.b16 %v90
    %v127 = vunpack.c.l.b16 %v91
    %v128 = vunpack.c.l.b16 %v92
    %v129 = vunpack.c.l.b16 %v93
    %v130 = vunpack.c.l.b16 %v94
    %v131 = vunpack.c.l.b16 %v95
    %v132 = vunpack.c.l.b16 %v96
    %v133 = vunpack.c.l.b16 %v97
    %v134 = vunpack.c.l.b16 %v98
    %v135 = vunpack.c.l.b16 %v99
    %v136 = vunpack.c.l.b16 %v100
    %v137 = vunpack.c.l.b16 %v101
    %v138 = vunpack.c.l.b16 %v102
    %v139 = vunpack.c.l.b16 %v103
    %v140 = vpack.c.b16 %v125, %v124
    %v141 = vpack.c.b16 %v127, %v126
    %v142 = vpack.c.b16 %v129, %v128
    %v143 = vpack.c.b16 %v131, %v130
    %v144 = vpack.c.b16 %v133, %v132
    %v145 = vpack.c.b16 %v135, %v134
    %v146 = vpack.c.b16 %v137, %v136
    %v147 = vpack.c.b16 %v139, %v138
    %156 = vmatprep.subr.bf16.mxu0 0
    %157 = vmatpush1.bf16.msra.mxu0 %v147
    %158 = vmatprep.subr.bf16.mxu0 0
    %159 = vmatpush1.bf16.msra.mxu0 %v146
    %160 = vmatprep.subr.bf16.mxu0 0
    %161 = vmatpush1.bf16.msra.mxu0 %v145
    %162 = vmatprep.subr.bf16.mxu0 0
    %163 = vmatpush1.bf16.msra.mxu0 %v144
    %164 = vmatprep.subr.bf16.mxu0 0
    %165 = vmatpush1.bf16.msra.mxu0 %v143
    %166 = vmatprep.subr.bf16.mxu0 0
    %167 = vmatpush1.bf16.msra.mxu0 %v142
    %168 = vmatprep.subr.bf16.mxu0 0
    %169 = vmatpush1.bf16.msra.mxu0 %v141
    %170 = vmatprep.subr.bf16.mxu0 0
    %171 = vmatpush1.bf16.msra.mxu0 %v140
    %172 = vmatprep.subr.bf16.mxu0 0
    %173 = vmatpush2.bf16.msra.mxu0 0
    %174 = vmatprep.subr.bf16.mxu0 0
    %175 = vmatpush2.bf16.msra.mxu0 0
    %176 = vmatprep.subr.bf16.mxu0 0
    %177 = vmatpush2.bf16.msra.mxu0 0
    %178 = vmatprep.subr.bf16.mxu0 0
    %179 = vmatpush2.bf16.msra.mxu0 0
    %180 = vmatprep.subr.bf16.mxu0 0
    %181 = vmatpush2.bf16.msra.mxu0 0
    %182 = vmatprep.subr.bf16.mxu0 0
    %183 = vmatpush2.bf16.msra.mxu0 0
    %184 = vmatprep.subr.bf16.mxu0 0
    %185 = vmatpush2.bf16.msra.mxu0 0
    %186 = vmatprep.subr.bf16.mxu0 0
    %187 = vmatpush2.bf16.msra.mxu0 0
    %188 = vmatprep.mubr.bf16.mxu0 0
    %189 = vmatmul.mubr.bf16.gmra.mxu0 %v68
    %v190 = vpop.f32.mrf.mxu0
    %v191 = vadd.f32 %v107, %v190
    %v192 = vpop.f32.mrf.mxu0
    %v193 = vpop.f32.mrf.mxu0
    %v194 = vadd.f32 %v107, %v193
    %v195 = vpop.f32.mrf.mxu0
    %196 = vdwg.mxu0
    %v197 = vmul.f32 %v191, 0.2
    %v198 = vmul.f32 %v194, 0.2
    %v199 = vmax.f32 %v191, %v197
    %v200 = vmax.f32 %v194, %v198
    %v201 = vpack.c.bf16 %v200, %v199
    %s202 = sshll.u32 %s70, 4
    %203 = dma.done %s75, %s202
    %s204 = scalar_lea.hbm %s2, 2048
    // Predicated region
    $region26: #{tpu_custom_call.1} parent=1 // pred_check
      _
    $region27: #{tpu_custom_call.1} parent=1 // pred_check_branch
      %206 = sbr.rel target = $region29
    $region28: #{tpu_custom_call.1} parent=1 // pred_region
      %207 = sst [smem:[#allocation12]] [#allocation17]
      %208 = sst [smem:[#allocation13]] [#allocation16]
    $region29: #{tpu_custom_call.1} parent=1 // pred_fallthru
      _
    %210 = shalt.err (0)
    %s212 = sshll.u32 [#allocation2], 4
    %s213 = int_to_ptr.vmem [resolvable:$true] %s212
    %215 = dma.hbm_to_vmem [thread:$0]  %s204, 1024, %s213, [#allocation3]
    %v216 = vld [vmem:[#allocation7 + $0x1] sm:$0x1]
    %v217 = vld [vmem:[%s74] sm:$0xf]
    %v218 = vld [vmem:[%s74 + $0x4] sm:$0xf]
    %v219 = vld [vmem:[%s74 + $0x8] sm:$0xf]
    %v220 = vld [vmem:[%s74 + $0xc] sm:$0xf]
    %v221 = vld [vmem:[%s74 + $0x10] sm:$0xf]
    %v222 = vld [vmem:[%s74 + $0x14] sm:$0xf]
    %v223 = vld [vmem:[%s74 + $0x18] sm:$0xf]
    %v224 = vld [vmem:[%s74 + $0x1c] sm:$0xf]
    %v225 = vld [vmem:[%s74 + $0x20] sm:$0xf]
    %v226 = vld [vmem:[%s74 + $0x24] sm:$0xf]
    %v227 = vld [vmem:[%s74 + $0x28] sm:$0xf]
    %v228 = vld [vmem:[%s74 + $0x2c] sm:$0xf]
    %v229 = vld [vmem:[%s74 + $0x30] sm:$0xf]
    %v230 = vld [vmem:[%s74 + $0x34] sm:$0xf]
    %v231 = vld [vmem:[%s74 + $0x38] sm:$0xf]
    %v232 = vld [vmem:[%s74 + $0x3c] sm:$0xf]
    %v233 = vlaneseq
    %v234 = vshrl.u32 %v233, 7
    %v235 = vsub.s32 0, %v234
    %v236 = vrot.slane %v216, %v235
    %v253 = vunpack.c.l.b16 %v217
    %v254 = vunpack.c.l.b16 %v218
    %v255 = vunpack.c.l.b16 %v219
    %v256 = vunpack.c.l.b16 %v220
    %v257 = vunpack.c.l.b16 %v221
    %v258 = vunpack.c.l.b16 %v222
    %v259 = vunpack.c.l.b16 %v223
    %v260 = vunpack.c.l.b16 %v224
    %v261 = vunpack.c.l.b16 %v225
    %v262 = vunpack.c.l.b16 %v226
    %v263 = vunpack.c.l.b16 %v227
    %v264 = vunpack.c.l.b16 %v228
    %v265 = vunpack.c.l.b16 %v229
    %v266 = vunpack.c.l.b16 %v230
    %v267 = vunpack.c.l.b16 %v231
    %v268 = vunpack.c.l.b16 %v232
    %v269 = vpack.c.b16 %v254, %v253
    %v270 = vpack.c.b16 %v256, %v255
    %v271 = vpack.c.b16 %v258, %v257
    %v272 = vpack.c.b16 %v260, %v259
    %v273 = vpack.c.b16 %v262, %v261
    %v274 = vpack.c.b16 %v264, %v263
    %v275 = vpack.c.b16 %v266, %v265
    %v276 = vpack.c.b16 %v268, %v267
    %285 = vmatprep.subr.bf16.mxu0 0
    %286 = vmatpush1.bf16.msra.mxu0 %v276
    %287 = vmatprep.subr.bf16.mxu0 0
    %288 = vmatpush1.bf16.msra.mxu0 %v275
    %289 = vmatprep.subr.bf16.mxu0 0
    %290 = vmatpush1.bf16.msra.mxu0 %v274
    %291 = vmatprep.subr.bf16.mxu0 0
    %292 = vmatpush1.bf16.msra.mxu0 %v273
    %293 = vmatprep.subr.bf16.mxu0 0
    %294 = vmatpush1.bf16.msra.mxu0 %v272
    %295 = vmatprep.subr.bf16.mxu0 0
    %296 = vmatpush1.bf16.msra.mxu0 %v271
    %297 = vmatprep.subr.bf16.mxu0 0
    %298 = vmatpush1.bf16.msra.mxu0 %v270
    %299 = vmatprep.subr.bf16.mxu0 0
    %300 = vmatpush1.bf16.msra.mxu0 %v269
    %301 = vmatprep.subr.bf16.mxu0 0
    %302 = vmatpush2.bf16.msra.mxu0 0
    %303 = vmatprep.subr.bf16.mxu0 0
    %304 = vmatpush2.bf16.msra.mxu0 0
    %305 = vmatprep.subr.bf16.mxu0 0
    %306 = vmatpush2.bf16.msra.mxu0 0
    %307 = vmatprep.subr.bf16.mxu0 0
    %308 = vmatpush2.bf16.msra.mxu0 0
    %309 = vmatprep.subr.bf16.mxu0 0
    %310 = vmatpush2.bf16.msra.mxu0 0
    %311 = vmatprep.subr.bf16.mxu0 0
    %312 = vmatpush2.bf16.msra.mxu0 0
    %313 = vmatprep.subr.bf16.mxu0 0
    %314 = vmatpush2.bf16.msra.mxu0 0
    %315 = vmatprep.subr.bf16.mxu0 0
    %316 = vmatpush2.bf16.msra.mxu0 0
    %317 = vmatprep.mubr.bf16.mxu0 0
    %318 = vmatmul.mubr.bf16.gmra.mxu0 %v201
    %v319 = vpop.f32.mrf.mxu0
    %v320 = vadd.f32 %v236, %v319
    %v321 = vpop.f32.mrf.mxu0
    %v322 = vpop.f32.mrf.mxu0
    %v323 = vadd.f32 %v236, %v322
    %v324 = vpop.f32.mrf.mxu0
    %325 = vdwg.mxu0
    %v326 = vmul.f32 %v320, 0.2
    %v327 = vmul.f32 %v323, 0.2
    %v328 = vmax.f32 %v320, %v326
    %v329 = vmax.f32 %v323, %v327
    %v330 = vpack.c.bf16 %v329, %v328
    %s331 = sshll.u32 %s70, 4
    %332 = dma.done [#allocation3], %s331
    %s333 = scalar_lea.hbm %s2, 3072
    // Predicated region
    $region30: #{tpu_custom_call.1} parent=1 // pred_check
      _
    $region31: #{tpu_custom_call.1} parent=1 // pred_check_branch
      %335 = sbr.rel target = $region33
    $region32: #{tpu_custom_call.1} parent=1 // pred_region
      %336 = sst [smem:[#allocation12]] [#allocation19]
      %337 = sst [smem:[#allocation13]] [#allocation18]
    $region33: #{tpu_custom_call.1} parent=1 // pred_fallthru
      _
    %339 = shalt.err (0)
    %s341 = sshll.u32 %s74, 4
    %s342 = int_to_ptr.vmem [resolvable:$true] %s341
    %344 = dma.hbm_to_vmem [thread:$0]  %s333, 1024, %s342, %s75
    %v345 = vld [vmem:[#allocation7 + $0x2] sm:$0x1]
    %v346 = vld [vmem:[#allocation2] sm:$0xf]
    %v347 = vld [vmem:[#allocation2 + $0x4] sm:$0xf]
    %v348 = vld [vmem:[#allocation2 + $0x8] sm:$0xf]
    %v349 = vld [vmem:[#allocation2 + $0xc] sm:$0xf]
    %v350 = vld [vmem:[#allocation2 + $0x10] sm:$0xf]
    %v351 = vld [vmem:[#allocation2 + $0x14] sm:$0xf]
    %v352 = vld [vmem:[#allocation2 + $0x18] sm:$0xf]
    %v353 = vld [vmem:[#allocation2 + $0x1c] sm:$0xf]
    %v354 = vld [vmem:[#allocation2 + $0x20] sm:$0xf]
    %v355 = vld [vmem:[#allocation2 + $0x24] sm:$0xf]
    %v356 = vld [vmem:[#allocation2 + $0x28] sm:$0xf]
    %v357 = vld [vmem:[#allocation2 + $0x2c] sm:$0xf]
    %v358 = vld [vmem:[#allocation2 + $0x30] sm:$0xf]
    %v359 = vld [vmem:[#allocation2 + $0x34] sm:$0xf]
    %v360 = vld [vmem:[#allocation2 + $0x38] sm:$0xf]
    %v361 = vld [vmem:[#allocation2 + $0x3c] sm:$0xf]
    %v362 = vlaneseq
    %v363 = vshrl.u32 %v362, 7
    %v364 = vsub.s32 0, %v363
    %v365 = vrot.slane %v345, %v364
    %v382 = vunpack.c.l.b16 %v346
    %v383 = vunpack.c.l.b16 %v347
    %v384 = vunpack.c.l.b16 %v348
    %v385 = vunpack.c.l.b16 %v349
    %v386 = vunpack.c.l.b16 %v350
    %v387 = vunpack.c.l.b16 %v351
    %v388 = vunpack.c.l.b16 %v352
    %v389 = vunpack.c.l.b16 %v353
    %v390 = vunpack.c.l.b16 %v354
    %v391 = vunpack.c.l.b16 %v355
    %v392 = vunpack.c.l.b16 %v356
    %v393 = vunpack.c.l.b16 %v357
    %v394 = vunpack.c.l.b16 %v358
    %v395 = vunpack.c.l.b16 %v359
    %v396 = vunpack.c.l.b16 %v360
    %v397 = vunpack.c.l.b16 %v361
    %v398 = vpack.c.b16 %v383, %v382
    %v399 = vpack.c.b16 %v385, %v384
    %v400 = vpack.c.b16 %v387, %v386
    %v401 = vpack.c.b16 %v389, %v388
    %v402 = vpack.c.b16 %v391, %v390
    %v403 = vpack.c.b16 %v393, %v392
    %v404 = vpack.c.b16 %v395, %v394
    %v405 = vpack.c.b16 %v397, %v396
    %414 = vmatprep.subr.bf16.mxu0 0
    %415 = vmatpush1.bf16.msra.mxu0 %v405
    %416 = vmatprep.subr.bf16.mxu0 0
    %417 = vmatpush1.bf16.msra.mxu0 %v404
    %418 = vmatprep.subr.bf16.mxu0 0
    %419 = vmatpush1.bf16.msra.mxu0 %v403
    %420 = vmatprep.subr.bf16.mxu0 0
    %421 = vmatpush1.bf16.msra.mxu0 %v402
    %422 = vmatprep.subr.bf16.mxu0 0
    %423 = vmatpush1.bf16.msra.mxu0 %v401
    %424 = vmatprep.subr.bf16.mxu0 0
    %425 = vmatpush1.bf16.msra.mxu0 %v400
    %426 = vmatprep.subr.bf16.mxu0 0
    %427 = vmatpush1.bf16.msra.mxu0 %v399
    %428 = vmatprep.subr.bf16.mxu0 0
    %429 = vmatpush1.bf16.msra.mxu0 %v398
    %430 = vmatprep.subr.bf16.mxu0 0
    %431 = vmatpush2.bf16.msra.mxu0 0
    %432 = vmatprep.subr.bf16.mxu0 0
    %433 = vmatpush2.bf16.msra.mxu0 0
    %434 = vmatprep.subr.bf16.mxu0 0
    %435 = vmatpush2.bf16.msra.mxu0 0
    %436 = vmatprep.subr.bf16.mxu0 0
    %437 = vmatpush2.bf16.msra.mxu0 0
    %438 = vmatprep.subr.bf16.mxu0 0
    %439 = vmatpush2.bf16.msra.mxu0 0
    %440 = vmatprep.subr.bf16.mxu0 0
    %441 = vmatpush2.bf16.msra.mxu0 0
    %442 = vmatprep.subr.bf16.mxu0 0
    %443 = vmatpush2.bf16.msra.mxu0 0
    %444 = vmatprep.subr.bf16.mxu0 0
    %445 = vmatpush2.bf16.msra.mxu0 0
    %446 = vmatprep.mubr.bf16.mxu0 0
    %447 = vmatmul.mubr.bf16.gmra.mxu0 %v330
    %v448 = vpop.f32.mrf.mxu0
    %v449 = vadd.f32 %v365, %v448
    %v450 = vpop.f32.mrf.mxu0
    %v451 = vpop.f32.mrf.mxu0
    %v452 = vadd.f32 %v365, %v451
    %v453 = vpop.f32.mrf.mxu0
    %454 = vdwg.mxu0
    %v455 = vmul.f32 %v449, 0.2
    %v456 = vmul.f32 %v452, 0.2
    %v457 = vmax.f32 %v449, %v455
    %v458 = vmax.f32 %v452, %v456
    %v459 = vpack.c.bf16 %v458, %v457
    %s460 = sshll.u32 %s70, 4
    %461 = dma.done %s75, %s460
    %s462 = scalar_lea.hbm %s2, 4096
    // Predicated region
    $region34: #{tpu_custom_call.1} parent=1 // pred_check
      _
    $region35: #{tpu_custom_call.1} parent=1 // pred_check_branch
      %464 = sbr.rel target = $region37
    $region36: #{tpu_custom_call.1} parent=1 // pred_region
      %465 = sst [smem:[#allocation12]] [#allocation21]
      %466 = sst [smem:[#allocation13]] [#allocation20]
    $region37: #{tpu_custom_call.1} parent=1 // pred_fallthru
      _
    %468 = shalt.err (0)
    %s470 = sshll.u32 [#allocation2], 4
    %s471 = int_to_ptr.vmem [resolvable:$true] %s470
    %473 = dma.hbm_to_vmem [thread:$0]  %s462, 1024, %s471, [#allocation3]
    %v474 = vld [vmem:[#allocation7 + $0x3] sm:$0x1]
    %v475 = vld [vmem:[%s74] sm:$0xf]
    %v476 = vld [vmem:[%s74 + $0x4] sm:$0xf]
    %v477 = vld [vmem:[%s74 + $0x8] sm:$0xf]
    %v478 = vld [vmem:[%s74 + $0xc] sm:$0xf]
    %v479 = vld [vmem:[%s74 + $0x10] sm:$0xf]
    %v480 = vld [vmem:[%s74 + $0x14] sm:$0xf]
    %v481 = vld [vmem:[%s74 + $0x18] sm:$0xf]
    %v482 = vld [vmem:[%s74 + $0x1c] sm:$0xf]
    %v483 = vld [vmem:[%s74 + $0x20] sm:$0xf]
    %v484 = vld [vmem:[%s74 + $0x24] sm:$0xf]
    %v485 = vld [vmem:[%s74 + $0x28] sm:$0xf]
    %v486 = vld [vmem:[%s74 + $0x2c] sm:$0xf]
    %v487 = vld [vmem:[%s74 + $0x30] sm:$0xf]
    %v488 = vld [vmem:[%s74 + $0x34] sm:$0xf]
    %v489 = vld [vmem:[%s74 + $0x38] sm:$0xf]
    %v490 = vld [vmem:[%s74 + $0x3c] sm:$0xf]
    %v491 = vlaneseq
    %v492 = vshrl.u32 %v491, 7
    %v493 = vsub.s32 0, %v492
    %v494 = vrot.slane %v474, %v493
    %v511 = vunpack.c.l.b16 %v475
    %v512 = vunpack.c.l.b16 %v476
    %v513 = vunpack.c.l.b16 %v477
    %v514 = vunpack.c.l.b16 %v478
    %v515 = vunpack.c.l.b16 %v479
    %v516 = vunpack.c.l.b16 %v480
    %v517 = vunpack.c.l.b16 %v481
    %v518 = vunpack.c.l.b16 %v482
    %v519 = vunpack.c.l.b16 %v483
    %v520 = vunpack.c.l.b16 %v484
    %v521 = vunpack.c.l.b16 %v485
    %v522 = vunpack.c.l.b16 %v486
    %v523 = vunpack.c.l.b16 %v487
    %v524 = vunpack.c.l.b16 %v488
    %v525 = vunpack.c.l.b16 %v489
    %v526 = vunpack.c.l.b16 %v490
    %v527 = vpack.c.b16 %v512, %v511
    %v528 = vpack.c.b16 %v514, %v513
    %v529 = vpack.c.b16 %v516, %v515
    %v530 = vpack.c.b16 %v518, %v517
    %v531 = vpack.c.b16 %v520, %v519
    %v532 = vpack.c.b16 %v522, %v521
    %v533 = vpack.c.b16 %v524, %v523
    %v534 = vpack.c.b16 %v526, %v525
    %543 = vmatprep.subr.bf16.mxu0 0
    %544 = vmatpush1.bf16.msra.mxu0 %v534
    %545 = vmatprep.subr.bf16.mxu0 0
    %546 = vmatpush1.bf16.msra.mxu0 %v533
    %547 = vmatprep.subr.bf16.mxu0 0
    %548 = vmatpush1.bf16.msra.mxu0 %v532
    %549 = vmatprep.subr.bf16.mxu0 0
    %550 = vmatpush1.bf16.msra.mxu0 %v531
    %551 = vmatprep.subr.bf16.mxu0 0
    %552 = vmatpush1.bf16.msra.mxu0 %v530
    %553 = vmatprep.subr.bf16.mxu0 0
    %554 = vmatpush1.bf16.msra.mxu0 %v529
    %555 = vmatprep.subr.bf16.mxu0 0
    %556 = vmatpush1.bf16.msra.mxu0 %v528
    %557 = vmatprep.subr.bf16.mxu0 0
    %558 = vmatpush1.bf16.msra.mxu0 %v527
    %559 = vmatprep.subr.bf16.mxu0 0
    %560 = vmatpush2.bf16.msra.mxu0 0
    %561 = vmatprep.subr.bf16.mxu0 0
    %562 = vmatpush2.bf16.msra.mxu0 0
    %563 = vmatprep.subr.bf16.mxu0 0
    %564 = vmatpush2.bf16.msra.mxu0 0
    %565 = vmatprep.subr.bf16.mxu0 0
    %566 = vmatpush2.bf16.msra.mxu0 0
    %567 = vmatprep.subr.bf16.mxu0 0
    %568 = vmatpush2.bf16.msra.mxu0 0
    %569 = vmatprep.subr.bf16.mxu0 0
    %570 = vmatpush2.bf16.msra.mxu0 0
    %571 = vmatprep.subr.bf16.mxu0 0
    %572 = vmatpush2.bf16.msra.mxu0 0
    %573 = vmatprep.subr.bf16.mxu0 0
    %574 = vmatpush2.bf16.msra.mxu0 0
    %575 = vmatprep.mubr.bf16.mxu0 0
    %576 = vmatmul.mubr.bf16.gmra.mxu0 %v459
    %v577 = vpop.f32.mrf.mxu0
    %v578 = vadd.f32 %v494, %v577
    %v579 = vpop.f32.mrf.mxu0
    %v580 = vpop.f32.mrf.mxu0
    %v581 = vadd.f32 %v494, %v580
    %v582 = vpop.f32.mrf.mxu0
    %583 = vdwg.mxu0
    %v584 = vmul.f32 %v578, 0.2
    %v585 = vmul.f32 %v581, 0.2
    %v586 = vmax.f32 %v578, %v584
    %v587 = vmax.f32 %v581, %v585
    %v588 = vpack.c.bf16 %v587, %v586
    %s589 = sshll.u32 %s70, 4
    %590 = dma.done [#allocation3], %s589
    %s591 = scalar_lea.hbm %s2, 5120
    // Predicated region
    $region38: #{tpu_custom_call.1} parent=1 // pred_check
      _
    $region39: #{tpu_custom_call.1} parent=1 // pred_check_branch
      %593 = sbr.rel target = $region41
    $region40: #{tpu_custom_call.1} parent=1 // pred_region
      %594 = sst [smem:[#allocation12]] [#allocation23]
      %595 = sst [smem:[#allocation13]] [#allocation22]
    $region41: #{tpu_custom_call.1} parent=1 // pred_fallthru
      _
    %597 = shalt.err (0)
    %s599 = sshll.u32 %s74, 4
    %s600 = int_to_ptr.vmem [resolvable:$true] %s599
    %602 = dma.hbm_to_vmem [thread:$0]  %s591, 1024, %s600, %s75
    %v603 = vld [vmem:[#allocation7 + $0x4] sm:$0x1]
    %v604 = vld [vmem:[#allocation2] sm:$0xf]
    %v605 = vld [vmem:[#allocation2 + $0x4] sm:$0xf]
    %v606 = vld [vmem:[#allocation2 + $0x8] sm:$0xf]
    %v607 = vld [vmem:[#allocation2 + $0xc] sm:$0xf]
    %v608 = vld [vmem:[#allocation2 + $0x10] sm:$0xf]
    %v609 = vld [vmem:[#allocation2 + $0x14] sm:$0xf]
    %v610 = vld [vmem:[#allocation2 + $0x18] sm:$0xf]
    %v611 = vld [vmem:[#allocation2 + $0x1c] sm:$0xf]
    %v612 = vld [vmem:[#allocation2 + $0x20] sm:$0xf]
    %v613 = vld [vmem:[#allocation2 + $0x24] sm:$0xf]
    %v614 = vld [vmem:[#allocation2 + $0x28] sm:$0xf]
    %v615 = vld [vmem:[#allocation2 + $0x2c] sm:$0xf]
    %v616 = vld [vmem:[#allocation2 + $0x30] sm:$0xf]
    %v617 = vld [vmem:[#allocation2 + $0x34] sm:$0xf]
    %v618 = vld [vmem:[#allocation2 + $0x38] sm:$0xf]
    %v619 = vld [vmem:[#allocation2 + $0x3c] sm:$0xf]
    %v620 = vlaneseq
    %v621 = vshrl.u32 %v620, 7
    %v622 = vsub.s32 0, %v621
    %v623 = vrot.slane %v603, %v622
    %v640 = vunpack.c.l.b16 %v604
    %v641 = vunpack.c.l.b16 %v605
    %v642 = vunpack.c.l.b16 %v606
    %v643 = vunpack.c.l.b16 %v607
    %v644 = vunpack.c.l.b16 %v608
    %v645 = vunpack.c.l.b16 %v609
    %v646 = vunpack.c.l.b16 %v610
    %v647 = vunpack.c.l.b16 %v611
    %v648 = vunpack.c.l.b16 %v612
    %v649 = vunpack.c.l.b16 %v613
    %v650 = vunpack.c.l.b16 %v614
    %v651 = vunpack.c.l.b16 %v615
    %v652 = vunpack.c.l.b16 %v616
    %v653 = vunpack.c.l.b16 %v617
    %v654 = vunpack.c.l.b16 %v618
    %v655 = vunpack.c.l.b16 %v619
    %v656 = vpack.c.b16 %v641, %v640
    %v657 = vpack.c.b16 %v643, %v642
    %v658 = vpack.c.b16 %v645, %v644
    %v659 = vpack.c.b16 %v647, %v646
    %v660 = vpack.c.b16 %v649, %v648
    %v661 = vpack.c.b16 %v651, %v650
    %v662 = vpack.c.b16 %v653, %v652
    %v663 = vpack.c.b16 %v655, %v654
    %672 = vmatprep.subr.bf16.mxu0 0
    %673 = vmatpush1.bf16.msra.mxu0 %v663
    %674 = vmatprep.subr.bf16.mxu0 0
    %675 = vmatpush1.bf16.msra.mxu0 %v662
    %676 = vmatprep.subr.bf16.mxu0 0
    %677 = vmatpush1.bf16.msra.mxu0 %v661
    %678 = vmatprep.subr.bf16.mxu0 0
    %679 = vmatpush1.bf16.msra.mxu0 %v660
    %680 = vmatprep.subr.bf16.mxu0 0
    %681 = vmatpush1.bf16.msra.mxu0 %v659
    %682 = vmatprep.subr.bf16.mxu0 0
    %683 = vmatpush1.bf16.msra.mxu0 %v658
    %684 = vmatprep.subr.bf16.mxu0 0
    %685 = vmatpush1.bf16.msra.mxu0 %v657
    %686 = vmatprep.subr.bf16.mxu0 0
    %687 = vmatpush1.bf16.msra.mxu0 %v656
    %688 = vmatprep.subr.bf16.mxu0 0
    %689 = vmatpush2.bf16.msra.mxu0 0
    %690 = vmatprep.subr.bf16.mxu0 0
    %691 = vmatpush2.bf16.msra.mxu0 0
    %692 = vmatprep.subr.bf16.mxu0 0
    %693 = vmatpush2.bf16.msra.mxu0 0
    %694 = vmatprep.subr.bf16.mxu0 0
    %695 = vmatpush2.bf16.msra.mxu0 0
    %696 = vmatprep.subr.bf16.mxu0 0
    %697 = vmatpush2.bf16.msra.mxu0 0
    %698 = vmatprep.subr.bf16.mxu0 0
    %699 = vmatpush2.bf16.msra.mxu0 0
    %700 = vmatprep.subr.bf16.mxu0 0
    %701 = vmatpush2.bf16.msra.mxu0 0
    %702 = vmatprep.subr.bf16.mxu0 0
    %703 = vmatpush2.bf16.msra.mxu0 0
    %704 = vmatprep.mubr.bf16.mxu0 0
    %705 = vmatmul.mubr.bf16.gmra.mxu0 %v588
    %v706 = vpop.f32.mrf.mxu0
    %v707 = vadd.f32 %v623, %v706
    %v708 = vpop.f32.mrf.mxu0
    %v709 = vpop.f32.mrf.mxu0
    %v710 = vadd.f32 %v623, %v709
    %v711 = vpop.f32.mrf.mxu0
    %712 = vdwg.mxu0
    %v713 = vmul.f32 %v707, 0.2
    %v714 = vmul.f32 %v710, 0.2
    %v715 = vmax.f32 %v707, %v713
    %v716 = vmax.f32 %v710, %v714
    %v717 = vpack.c.bf16 %v716, %v715
    %s718 = sshll.u32 %s70, 4
    %719 = dma.done %s75, %s718
    %s720 = scalar_lea.hbm %s2, 6144
    // Predicated region
    $region42: #{tpu_custom_call.1} parent=1 // pred_check
      _
    $region43: #{tpu_custom_call.1} parent=1 // pred_check_branch
      %722 = sbr.rel target = $region45
    $region44: #{tpu_custom_call.1} parent=1 // pred_region
      %723 = sst [smem:[#allocation12]] [#allocation25]
      %724 = sst [smem:[#allocation13]] [#allocation24]
    $region45: #{tpu_custom_call.1} parent=1 // pred_fallthru
      _
    %726 = shalt.err (0)
    %s728 = sshll.u32 [#allocation2], 4
    %s729 = int_to_ptr.vmem [resolvable:$true] %s728
    %731 = dma.hbm_to_vmem [thread:$0]  %s720, 1024, %s729, [#allocation3]
    %v732 = vld [vmem:[#allocation7 + $0x5] sm:$0x1]
    %v733 = vld [vmem:[%s74] sm:$0xf]
    %v734 = vld [vmem:[%s74 + $0x4] sm:$0xf]
    %v735 = vld [vmem:[%s74 + $0x8] sm:$0xf]
    %v736 = vld [vmem:[%s74 + $0xc] sm:$0xf]
    %v737 = vld [vmem:[%s74 + $0x10] sm:$0xf]
    %v738 = vld [vmem:[%s74 + $0x14] sm:$0xf]
    %v739 = vld [vmem:[%s74 + $0x18] sm:$0xf]
    %v740 = vld [vmem:[%s74 + $0x1c] sm:$0xf]
    %v741 = vld [vmem:[%s74 + $0x20] sm:$0xf]
    %v742 = vld [vmem:[%s74 + $0x24] sm:$0xf]
    %v743 = vld [vmem:[%s74 + $0x28] sm:$0xf]
    %v744 = vld [vmem:[%s74 + $0x2c] sm:$0xf]
    %v745 = vld [vmem:[%s74 + $0x30] sm:$0xf]
    %v746 = vld [vmem:[%s74 + $0x34] sm:$0xf]
    %v747 = vld [vmem:[%s74 + $0x38] sm:$0xf]
    %v748 = vld [vmem:[%s74 + $0x3c] sm:$0xf]
    %v749 = vlaneseq
    %v750 = vshrl.u32 %v749, 7
    %v751 = vsub.s32 0, %v750
    %v752 = vrot.slane %v732, %v751
    %v769 = vunpack.c.l.b16 %v733
    %v770 = vunpack.c.l.b16 %v734
    %v771 = vunpack.c.l.b16 %v735
    %v772 = vunpack.c.l.b16 %v736
    %v773 = vunpack.c.l.b16 %v737
    %v774 = vunpack.c.l.b16 %v738
    %v775 = vunpack.c.l.b16 %v739
    %v776 = vunpack.c.l.b16 %v740
    %v777 = vunpack.c.l.b16 %v741
    %v778 = vunpack.c.l.b16 %v742
    %v779 = vunpack.c.l.b16 %v743
    %v780 = vunpack.c.l.b16 %v744
    %v781 = vunpack.c.l.b16 %v745
    %v782 = vunpack.c.l.b16 %v746
    %v783 = vunpack.c.l.b16 %v747
    %v784 = vunpack.c.l.b16 %v748
    %v785 = vpack.c.b16 %v770, %v769
    %v786 = vpack.c.b16 %v772, %v771
    %v787 = vpack.c.b16 %v774, %v773
    %v788 = vpack.c.b16 %v776, %v775
    %v789 = vpack.c.b16 %v778, %v777
    %v790 = vpack.c.b16 %v780, %v779
    %v791 = vpack.c.b16 %v782, %v781
    %v792 = vpack.c.b16 %v784, %v783
    %801 = vmatprep.subr.bf16.mxu0 0
    %802 = vmatpush1.bf16.msra.mxu0 %v792
    %803 = vmatprep.subr.bf16.mxu0 0
    %804 = vmatpush1.bf16.msra.mxu0 %v791
    %805 = vmatprep.subr.bf16.mxu0 0
    %806 = vmatpush1.bf16.msra.mxu0 %v790
    %807 = vmatprep.subr.bf16.mxu0 0
    %808 = vmatpush1.bf16.msra.mxu0 %v789
    %809 = vmatprep.subr.bf16.mxu0 0
    %810 = vmatpush1.bf16.msra.mxu0 %v788
    %811 = vmatprep.subr.bf16.mxu0 0
    %812 = vmatpush1.bf16.msra.mxu0 %v787
    %813 = vmatprep.subr.bf16.mxu0 0
    %814 = vmatpush1.bf16.msra.mxu0 %v786
    %815 = vmatprep.subr.bf16.mxu0 0
    %816 = vmatpush1.bf16.msra.mxu0 %v785
    %817 = vmatprep.subr.bf16.mxu0 0
    %818 = vmatpush2.bf16.msra.mxu0 0
    %819 = vmatprep.subr.bf16.mxu0 0
    %820 = vmatpush2.bf16.msra.mxu0 0
    %821 = vmatprep.subr.bf16.mxu0 0
    %822 = vmatpush2.bf16.msra.mxu0 0
    %823 = vmatprep.subr.bf16.mxu0 0
    %824 = vmatpush2.bf16.msra.mxu0 0
    %825 = vmatprep.subr.bf16.mxu0 0
    %826 = vmatpush2.bf16.msra.mxu0 0
    %827 = vmatprep.subr.bf16.mxu0 0
    %828 = vmatpush2.bf16.msra.mxu0 0
    %829 = vmatprep.subr.bf16.mxu0 0
    %830 = vmatpush2.bf16.msra.mxu0 0
    %831 = vmatprep.subr.bf16.mxu0 0
    %832 = vmatpush2.bf16.msra.mxu0 0
    %833 = vmatprep.mubr.bf16.mxu0 0
    %834 = vmatmul.mubr.bf16.gmra.mxu0 %v717
    %v835 = vpop.f32.mrf.mxu0
    %v836 = vadd.f32 %v752, %v835
    %v837 = vpop.f32.mrf.mxu0
    %v838 = vpop.f32.mrf.mxu0
    %v839 = vadd.f32 %v752, %v838
    %v840 = vpop.f32.mrf.mxu0
    %841 = vdwg.mxu0
    %v842 = vmul.f32 %v836, 0.2
    %v843 = vmul.f32 %v839, 0.2
    %v844 = vmax.f32 %v836, %v842
    %v845 = vmax.f32 %v839, %v843
    %v846 = vpack.c.bf16 %v845, %v844
    %s847 = sshll.u32 %s70, 4
    %848 = dma.done [#allocation3], %s847
    %s849 = scalar_lea.hbm %s2, 7168
    // Predicated region
    $region46: #{tpu_custom_call.1} parent=1 // pred_check
      _
    $region47: #{tpu_custom_call.1} parent=1 // pred_check_branch
      %851 = sbr.rel target = $region49
    $region48: #{tpu_custom_call.1} parent=1 // pred_region
      %852 = sst [smem:[#allocation12]] [#allocation27]
      %853 = sst [smem:[#allocation13]] [#allocation26]
    $region49: #{tpu_custom_call.1} parent=1 // pred_fallthru
      _
    %855 = shalt.err (0)
    %s857 = sshll.u32 %s74, 4
    %s858 = int_to_ptr.vmem [resolvable:$true] %s857
    %860 = dma.hbm_to_vmem [thread:$0]  %s849, 1024, %s858, %s75
    %v861 = vld [vmem:[#allocation7 + $0x6] sm:$0x1]
    %v862 = vld [vmem:[#allocation2] sm:$0xf]
    %v863 = vld [vmem:[#allocation2 + $0x4] sm:$0xf]
    %v864 = vld [vmem:[#allocation2 + $0x8] sm:$0xf]
    %v865 = vld [vmem:[#allocation2 + $0xc] sm:$0xf]
    %v866 = vld [vmem:[#allocation2 + $0x10] sm:$0xf]
    %v867 = vld [vmem:[#allocation2 + $0x14] sm:$0xf]
    %v868 = vld [vmem:[#allocation2 + $0x18] sm:$0xf]
    %v869 = vld [vmem:[#allocation2 + $0x1c] sm:$0xf]
    %v870 = vld [vmem:[#allocation2 + $0x20] sm:$0xf]
    %v871 = vld [vmem:[#allocation2 + $0x24] sm:$0xf]
    %v872 = vld [vmem:[#allocation2 + $0x28] sm:$0xf]
    %v873 = vld [vmem:[#allocation2 + $0x2c] sm:$0xf]
    %v874 = vld [vmem:[#allocation2 + $0x30] sm:$0xf]
    %v875 = vld [vmem:[#allocation2 + $0x34] sm:$0xf]
    %v876 = vld [vmem:[#allocation2 + $0x38] sm:$0xf]
    %v877 = vld [vmem:[#allocation2 + $0x3c] sm:$0xf]
    %v878 = vlaneseq
    %v879 = vshrl.u32 %v878, 7
    %v880 = vsub.s32 0, %v879
    %v881 = vrot.slane %v861, %v880
    %v898 = vunpack.c.l.b16 %v862
    %v899 = vunpack.c.l.b16 %v863
    %v900 = vunpack.c.l.b16 %v864
    %v901 = vunpack.c.l.b16 %v865
    %v902 = vunpack.c.l.b16 %v866
    %v903 = vunpack.c.l.b16 %v867
    %v904 = vunpack.c.l.b16 %v868
    %v905 = vunpack.c.l.b16 %v869
    %v906 = vunpack.c.l.b16 %v870
    %v907 = vunpack.c.l.b16 %v871
    %v908 = vunpack.c.l.b16 %v872
    %v909 = vunpack.c.l.b16 %v873
    %v910 = vunpack.c.l.b16 %v874
    %v911 = vunpack.c.l.b16 %v875
    %v912 = vunpack.c.l.b16 %v876
    %v913 = vunpack.c.l.b16 %v877
    %v914 = vpack.c.b16 %v899, %v898
    %v915 = vpack.c.b16 %v901, %v900
    %v916 = vpack.c.b16 %v903, %v902
    %v917 = vpack.c.b16 %v905, %v904
    %v918 = vpack.c.b16 %v907, %v906
    %v919 = vpack.c.b16 %v909, %v908
    %v920 = vpack.c.b16 %v911, %v910
    %v921 = vpack.c.b16 %v913, %v912
    %930 = vmatprep.subr.bf16.mxu0 0
    %931 = vmatpush1.bf16.msra.mxu0 %v921
    %932 = vmatprep.subr.bf16.mxu0 0
    %933 = vmatpush1.bf16.msra.mxu0 %v920
    %934 = vmatprep.subr.bf16.mxu0 0
    %935 = vmatpush1.bf16.msra.mxu0 %v919
    %936 = vmatprep.subr.bf16.mxu0 0
    %937 = vmatpush1.bf16.msra.mxu0 %v918
    %938 = vmatprep.subr.bf16.mxu0 0
    %939 = vmatpush1.bf16.msra.mxu0 %v917
    %940 = vmatprep.subr.bf16.mxu0 0
    %941 = vmatpush1.bf16.msra.mxu0 %v916
    %942 = vmatprep.subr.bf16.mxu0 0
    %943 = vmatpush1.bf16.msra.mxu0 %v915
    %944 = vmatprep.subr.bf16.mxu0 0
    %945 = vmatpush1.bf16.msra.mxu0 %v914
    %946 = vmatprep.subr.bf16.mxu0 0
    %947 = vmatpush2.bf16.msra.mxu0 0
    %948 = vmatprep.subr.bf16.mxu0 0
    %949 = vmatpush2.bf16.msra.mxu0 0
    %950 = vmatprep.subr.bf16.mxu0 0
    %951 = vmatpush2.bf16.msra.mxu0 0
    %952 = vmatprep.subr.bf16.mxu0 0
    %953 = vmatpush2.bf16.msra.mxu0 0
    %954 = vmatprep.subr.bf16.mxu0 0
    %955 = vmatpush2.bf16.msra.mxu0 0
    %956 = vmatprep.subr.bf16.mxu0 0
    %957 = vmatpush2.bf16.msra.mxu0 0
    %958 = vmatprep.subr.bf16.mxu0 0
    %959 = vmatpush2.bf16.msra.mxu0 0
    %960 = vmatprep.subr.bf16.mxu0 0
    %961 = vmatpush2.bf16.msra.mxu0 0
    %962 = vmatprep.mubr.bf16.mxu0 0
    %963 = vmatmul.mubr.bf16.gmra.mxu0 %v846
    %v964 = vpop.f32.mrf.mxu0
    %v965 = vadd.f32 %v881, %v964
    %v966 = vpop.f32.mrf.mxu0
    %v967 = vpop.f32.mrf.mxu0
    %v968 = vadd.f32 %v881, %v967
    %v969 = vpop.f32.mrf.mxu0
    %970 = vdwg.mxu0
    %v971 = vmul.f32 %v965, 0.2
    %v972 = vmul.f32 %v968, 0.2
    %v973 = vmax.f32 %v965, %v971
    %v974 = vmax.f32 %v968, %v972
    %v975 = vpack.c.bf16 %v974, %v973
    %s976 = sshll.u32 %s70, 4
    %977 = dma.done %s75, %s976
    %v978 = vld [vmem:[#allocation7 + $0x7] sm:$0x1]
    %v979 = vld [vmem:[%s74] sm:$0xf]
    %v980 = vld [vmem:[%s74 + $0x4] sm:$0xf]
    %v981 = vld [vmem:[%s74 + $0x8] sm:$0xf]
    %v982 = vld [vmem:[%s74 + $0xc] sm:$0xf]
    %v983 = vld [vmem:[%s74 + $0x10] sm:$0xf]
    %v984 = vld [vmem:[%s74 + $0x14] sm:$0xf]
    %v985 = vld [vmem:[%s74 + $0x18] sm:$0xf]
    %v986 = vld [vmem:[%s74 + $0x1c] sm:$0xf]
    %v987 = vld [vmem:[%s74 + $0x20] sm:$0xf]
    %v988 = vld [vmem:[%s74 + $0x24] sm:$0xf]
    %v989 = vld [vmem:[%s74 + $0x28] sm:$0xf]
    %v990 = vld [vmem:[%s74 + $0x2c] sm:$0xf]
    %v991 = vld [vmem:[%s74 + $0x30] sm:$0xf]
    %v992 = vld [vmem:[%s74 + $0x34] sm:$0xf]
    %v993 = vld [vmem:[%s74 + $0x38] sm:$0xf]
    %v994 = vld [vmem:[%s74 + $0x3c] sm:$0xf]
    %v995 = vlaneseq
    %v996 = vshrl.u32 %v995, 7
    %v997 = vsub.s32 0, %v996
    %v998 = vrot.slane %v978, %v997
    %v1015 = vunpack.c.l.b16 %v979
    %v1016 = vunpack.c.l.b16 %v980
    %v1017 = vunpack.c.l.b16 %v981
    %v1018 = vunpack.c.l.b16 %v982
    %v1019 = vunpack.c.l.b16 %v983
    %v1020 = vunpack.c.l.b16 %v984
    %v1021 = vunpack.c.l.b16 %v985
    %v1022 = vunpack.c.l.b16 %v986
    %v1023 = vunpack.c.l.b16 %v987
    %v1024 = vunpack.c.l.b16 %v988
    %v1025 = vunpack.c.l.b16 %v989
    %v1026 = vunpack.c.l.b16 %v990
    %v1027 = vunpack.c.l.b16 %v991
    %v1028 = vunpack.c.l.b16 %v992
    %v1029 = vunpack.c.l.b16 %v993
    %v1030 = vunpack.c.l.b16 %v994
    %v1031 = vpack.c.b16 %v1016, %v1015
    %v1032 = vpack.c.b16 %v1018, %v1017
    %v1033 = vpack.c.b16 %v1020, %v1019
    %v1034 = vpack.c.b16 %v1022, %v1021
    %v1035 = vpack.c.b16 %v1024, %v1023
    %v1036 = vpack.c.b16 %v1026, %v1025
    %v1037 = vpack.c.b16 %v1028, %v1027
    %v1038 = vpack.c.b16 %v1030, %v1029
    %1047 = vmatprep.subr.bf16.mxu0 0
    %1048 = vmatpush1.bf16.msra.mxu0 %v1038
    %1049 = vmatprep.subr.bf16.mxu0 0
    %1050 = vmatpush1.bf16.msra.mxu0 %v1037
    %1051 = vmatprep.subr.bf16.mxu0 0
    %1052 = vmatpush1.bf16.msra.mxu0 %v1036
    %1053 = vmatprep.subr.bf16.mxu0 0
    %1054 = vmatpush1.bf16.msra.mxu0 %v1035
    %1055 = vmatprep.subr.bf16.mxu0 0
    %1056 = vmatpush1.bf16.msra.mxu0 %v1034
    %1057 = vmatprep.subr.bf16.mxu0 0
    %1058 = vmatpush1.bf16.msra.mxu0 %v1033
    %1059 = vmatprep.subr.bf16.mxu0 0
    %1060 = vmatpush1.bf16.msra.mxu0 %v1032
    %1061 = vmatprep.subr.bf16.mxu0 0
    %1062 = vmatpush1.bf16.msra.mxu0 %v1031
    %1063 = vmatprep.subr.bf16.mxu0 0
    %1064 = vmatpush2.bf16.msra.mxu0 0
    %1065 = vmatprep.subr.bf16.mxu0 0
    %1066 = vmatpush2.bf16.msra.mxu0 0
    %1067 = vmatprep.subr.bf16.mxu0 0
    %1068 = vmatpush2.bf16.msra.mxu0 0
    %1069 = vmatprep.subr.bf16.mxu0 0
    %1070 = vmatpush2.bf16.msra.mxu0 0
    %1071 = vmatprep.subr.bf16.mxu0 0
    %1072 = vmatpush2.bf16.msra.mxu0 0
    %1073 = vmatprep.subr.bf16.mxu0 0
    %1074 = vmatpush2.bf16.msra.mxu0 0
    %1075 = vmatprep.subr.bf16.mxu0 0
    %1076 = vmatpush2.bf16.msra.mxu0 0
    %1077 = vmatprep.subr.bf16.mxu0 0
    %1078 = vmatpush2.bf16.msra.mxu0 0
    %1079 = vmatprep.mubr.bf16.mxu0 0
    %1080 = vmatmul.mubr.bf16.gmra.mxu0 %v975
    %v1081 = vpop.f32.mrf.mxu0
    %v1082 = vadd.f32 %v998, %v1081
    %v1083 = vpop.f32.mrf.mxu0
    %v1084 = vpop.f32.mrf.mxu0
    %v1085 = vadd.f32 %v998, %v1084
    %v1086 = vpop.f32.mrf.mxu0
    %1087 = vdwg.mxu0
    %v1088 = vmul.f32 %v1082, 0.2
    %v1089 = vmul.f32 %v1085, 0.2
    %v1090 = vmax.f32 %v1082, %v1088
    %v1091 = vmax.f32 %v1085, %v1089
    %1092 = vst [vmem:[#allocation9] sm:$0xff] %v1090
    %1093 = vst [vmem:[#allocation9 + $0x8] sm:$0xff] %v1091
    // Predicated region
    $region50: #{tpu_custom_call.1} parent=1 // pred_check
      _
    $region51: #{tpu_custom_call.1} parent=1 // pred_check_branch
      %1095 = sbr.rel (0) target = $region53
    $region52: #{tpu_custom_call.1} parent=1 // pred_region
      %s1097 = ssub.s32 256, 256
      %1098 = vsyncadd [#allocation6], %s1097
      %s1099 = sshll.u32 [#allocation9], 4
      %s1100 = int_to_ptr.vmem [resolvable:$true] %s1099
      %1105 = dma.vmem_to_hbm [thread:$0]  %s1100, 256, %s3, [#allocation6], 128, 128, 8
    $region53: #{tpu_custom_call.1} parent=1 // pred_fallthru
      _
    // Predicated region
    $region54: #{tpu_custom_call.1} parent=1 // pred_check
      _
    $region55: #{tpu_custom_call.1} parent=1 // pred_check_branch
      %1107 = sbr.rel (0) target = $region57
    $region56: #{tpu_custom_call.1} parent=1 // pred_region
      %1108 = dma.done [#allocation6], 256
    $region57: #{tpu_custom_call.1} parent=1 // pred_fallthru
      _
    %1109 = vsyncpa [#allocation5], 1
    %1110 = vsyncpa [#allocation8], 1
    %1111 = vsyncpa [#allocation6], 1
  %1112 = vsyncmov [#allocation3]
  %s1113 = vpop.sfrf %1112
  %p1114 = scmp.eq.s32.totalorder %s1113, 0
  %p1115 = pneg %p1114
  %1117 = shalt.err (%p1115)
  %s1118 = scalar_lea.sflag [#allocation3], 1
  %1119 = vsyncmov %s1118
  %s1120 = vpop.sfrf %1119
  %p1121 = scmp.eq.s32.totalorder %s1120, 0
  %p1122 = pneg %p1121
  %1124 = shalt.err (%p1122)

</llo_original>
